<compile_context>
chip_gen: v5e
topology: v5e:2x2
jax: 0.10.0
libtpu: 0.0.40
codegen_flags: <defaults>
</compile_context>

<pallas_src>
import jax
import jax.numpy as jnp
from jax.experimental import pallas as pl
from jax.experimental.pallas import tpu as pltpu

_LANES = 128                 # lane-dense minor dim (full vreg lanes, unmasked vst)
_TILE_ROWS = 4096            # (4096, 128) f32 tile = 2 MiB -> 8 MiB double-buffered
_CHUNK = _TILE_ROWS * _LANES
_PALLAS_MIN_N = _CHUNK       # below ~1 tile, fused XLA scale+bias is already at roofline


def _scale_bias_kernel(w_ref, b_ref, x_ref, o_ref):
    """y = x * w + b on a lane-dense (TILE_ROWS, 128) tile.

    w_ref / b_ref: scalar-prefetch SMEM refs of shape (1,).
    x_ref / o_ref: (TILE_ROWS, 128) VMEM tiles (last block may be partial/masked).
    NOTE: strictly elementwise — no tile-wide reductions, so garbage in the
    masked out-of-bounds rows of a partial last block can never leak out.
    """
    w = w_ref[0]
    b = b_ref[0]
    o_ref[...] = (x_ref[...].astype(jnp.float32) * w + b).astype(o_ref.dtype)


def _launch(x2d, w, b):
    """Run the tiled scale+bias kernel on a lane-dense (rows, 128) view."""
    rows = x2d.shape[0]
    grid = (pl.cdiv(rows, _TILE_ROWS),)
    return pl.pallas_call(
        _scale_bias_kernel,
        out_shape=jax.ShapeDtypeStruct((rows, _LANES), jnp.float32),
        grid_spec=pltpu.PrefetchScalarGridSpec(
            num_scalar_prefetch=2,  # w, b -> SMEM scalars (no per-step VMEM DMA)
            grid=grid,
            in_specs=[
                pl.BlockSpec((_TILE_ROWS, _LANES), lambda i, w_s, b_s: (i, 0)),
            ],
            out_specs=pl.BlockSpec((_TILE_ROWS, _LANES), lambda i, w_s, b_s: (i, 0)),
        ),
        compiler_params=pltpu.CompilerParams(
            # Megacore: shard grid steps across v7x's 2 TensorCores (no-op on
            # v5e/v6e). 2 MiB tiles, in+out double-buffered = 8 MiB, fits every
            # generation's scoped-VMEM default, so no vmem_limit_bytes needed.
            dimension_semantics=("parallel",),
        ),
    )(w, b, x2d)


def watermelon_forward(x, weight, bias):
    """Pallas equivalent of watermelonModule.forward.

    Args:
      x:      (N, 1) float array
      weight: (1, 1) float32  -- nn.Linear(1, 1).weight
      bias:   (1,)   float32  -- nn.Linear(1, 1).bias
    Returns:
      (N, 1) float32, equal to x @ weight.T + bias.
    """
    n = x.shape[0]
    w = weight.reshape(1).astype(jnp.float32)
    b = bias.reshape(1).astype(jnp.float32)

    # Tiny inputs: fused XLA scale+bias already hits HBM roofline with zero
    # launch/pipelining overhead; the kernel cannot beat it at these sizes.
    if n < _PALLAS_MIN_N:
        return (x.astype(jnp.float32) * w[0] + b[0]).astype(jnp.float32)

    flat = x.reshape(n)  # (N,1)->(N,) is a contiguous reshape (bitcast)

    if n % _LANES == 0:
        # Zero-copy main path: (N,) -> (N//128, 128) is a bitcast; pl.cdiv grid
        # masks a partial last row-block, so no pad and no output trim.
        rows = n // _LANES
        y2d = _launch(flat.reshape(rows, _LANES), w, b)
        return y2d.reshape(n, 1)

    # Ragged path (N % 128 != 0): pad only to the next multiple of 128, then
    # trim. Costs two extra HBM passes but only triggers for misaligned N.
    padded = pl.cdiv(n, _LANES) * _LANES
    flat = jnp.pad(flat, (0, padded - n))
    y2d = _launch(flat.reshape(padded // _LANES, _LANES), w, b)
    return y2d.reshape(padded)[:n].reshape(n, 1)


if __name__ == "__main__":
    key = jax.random.PRNGKey(0)
    kx, kw, kb = jax.random.split(key, 3)

    # nn.Linear(1, 1)-shaped parameters (PyTorch uses U(-1, 1) for fan_in=1).
    weight = jax.random.uniform(kw, (1, 1), dtype=jnp.float32, minval=-1.0, maxval=1.0)
    bias = jax.random.uniform(kb, (1,), dtype=jnp.float32, minval=-1.0, maxval=1.0)

    fwd = jax.jit(watermelon_forward)

    def check(n, key):
        x = jax.random.normal(key, (n, 1), dtype=jnp.float32)
        y = jax.block_until_ready(fwd(x, weight, bias))
        y_ref = x @ weight.T + bias
        assert y.shape == (n, 1)
        assert jnp.allclose(y, y_ref, atol=1e-6, rtol=1e-6), f"mismatch at N={n}"

    keys = jax.random.split(kx, 3)
    # Main zero-copy path: exactly 8 even grid steps (megacore/pipeline friendly).
    check(8 * _CHUNK, keys[0])
    # Zero-copy path with a masked partial last row-block (N % 128 == 0).
    check(_CHUNK + 5 * _LANES, keys[1])
    # Ragged N (not a multiple of 128): minimal 128-pad fallback path.
    check(_CHUNK + 1000, keys[2])

    # Original watermelon toy (N = 3) uses the plain-JAX fallback.
    x_small = jnp.array([[1.0], [2.0], [3.0]], dtype=jnp.float32)
    y_small = jax.block_until_ready(fwd(x_small, weight, bias))
    assert jnp.allclose(y_small, x_small @ weight.T + bias, atol=1e-6)

    print("KERNEL_OK")
</pallas_src>

<mosaic_0001>
module attributes {stable_mosaic.version = 11 : i64} {
  func.func @_scale_bias_kernel(%arg0: i32, %arg1: memref<1xf32, #tpu.memory_space<smem>>, %arg2: memref<1xf32, #tpu.memory_space<smem>>, %arg3: memref<4096x128xf32, #tpu.memory_space<vmem>>, %arg4: memref<4096x128xf32, #tpu.memory_space<vmem>>) attributes {dimension_semantics = [#tpu.dimension_semantics<parallel>], iteration_bounds = array<i64: 8>, scalar_prefetch = 2 : i64, scratch_operands = 0 : i64, tpu.core_type = #tpu.core_type<tc>, window_params = [{transform_indices = @transform_0, window_bounds = array<i64: 4096, 128>}, {transform_indices = @transform_1, window_bounds = array<i64: 4096, 128>}]} {
    %c0 = arith.constant 0 : index
    %0 = memref.load %arg1[%c0] : memref<1xf32, #tpu.memory_space<smem>>
    %c0_0 = arith.constant 0 : index
    %1 = memref.load %arg2[%c0_0] : memref<1xf32, #tpu.memory_space<smem>>
    %c0_1 = arith.constant 0 : index
    %c0_2 = arith.constant 0 : index
    %2 = vector.load %arg3[%c0_1, %c0_2] : memref<4096x128xf32, #tpu.memory_space<vmem>>, vector<4096x128xf32>
    %3 = vector.broadcast %0 : f32 to vector<4096x128xf32>
    %4 = arith.mulf %2, %3 : vector<4096x128xf32>
    %5 = vector.broadcast %1 : f32 to vector<4096x128xf32>
    %6 = arith.addf %4, %5 : vector<4096x128xf32>
    %c0_3 = arith.constant 0 : index
    %c0_4 = arith.constant 0 : index
    %7 = vector.load %arg4[%c0_3, %c0_4] : memref<4096x128xf32, #tpu.memory_space<vmem>>, vector<4096x128xf32>
    tpu.vector_store %arg4[%c0_3, %c0_4], %6 {strides = array<i32>} : memref<4096x128xf32, #tpu.memory_space<vmem>>, vector<4096x128xf32>,
    return
  }
  func.func @transform_0(%arg0: i32, %arg1: memref<1xf32, #tpu.memory_space<smem>>, %arg2: memref<1xf32, #tpu.memory_space<smem>>) -> (i32, i32) {
    %c0_i32 = arith.constant 0 : i32
    %c0_i32_0 = arith.constant 0 : i32
    return %arg0, %c0_i32 : i32, i32
  }
  func.func @transform_1(%arg0: i32, %arg1: memref<1xf32, #tpu.memory_space<smem>>, %arg2: memref<1xf32, #tpu.memory_space<smem>>) -> (i32, i32) {
    %c0_i32 = arith.constant 0 : i32
    %c0_i32_0 = arith.constant 0 : i32
    return %arg0, %c0_i32 : i32, i32
  }
}

</mosaic_0001>

<llo_original>
// kernel: watermelon_forward.1
$region0: #{watermelon_forward.1}
  #allocation0 [shape = 'u32[]', space=smem, size = 0x4, offset = 0x4, fixed_abs, tag = 'smem constant byte address 0x4 - core index']
  #allocation1 [shape = 'u32[72,128]{1,0:T(1,128)}', space=vmem, size = 0x9000, scoped, tag = 'internal scratch']
  #allocation2 [shape = 's32[1]{0}', space=sflag, size = 0x4, scoped, tag = 'scoped memory for watermelon_forward.1']
  #allocation3 [shape = 'f32[1]{0:T(128)S(6)}', space=smem, size = 0x200, scoped, tag = 'prefetched SMEM operand 0']
  #allocation4 [shape = 'f32[1]{0:T(128)S(6)}', space=smem, size = 0x200, scoped, tag = 'prefetched SMEM operand 1']
  %s0 = inlined_call_operand.<no memory space> [shape: f32[1], index: 0, kind: input, shape index: {}]
  %s1 = inlined_call_operand.<no memory space> [shape: f32[1], index: 1, kind: input, shape index: {}]
  %s2 = inlined_call_operand.hbm [shape: f32[32768,128], index: 2, kind: input, shape index: {}]
  %s3 = inlined_call_operand.hbm [shape: f32[32768,128], index: 3, kind: output, shape index: {}]
  %s4 = sld [smem:[#allocation0]]
  $region41: #{watermelon_forward.1} parent=0
    _
  %s6 = ssub.s32 1, %s4
  %s7 = scalar_select 0, %s6, %s4
  %8 = sst [smem:[#allocation3]] %s0
  %9 = sst [smem:[#allocation4]] %s1
  $region1: #{watermelon_forward.1} parent=0
    #allocation5 [shape = 'u8[4194304]{0}', space=vmem, size = 0x400000, scoped, tag = 'input window, operand 2']
    #allocation6 [shape = 's32[2]{0}', space=sflag, size = 0x8, scoped, tag = 'scoped memory for watermelon_forward.1']
    #allocation7 [shape = 's32[2]{0}', space=sflag, size = 0x8, scoped, tag = 'scoped memory for watermelon_forward.1']
    #allocation8 [shape = 'u8[4194304]{0}', space=vmem, size = 0x400000, scoped, tag = 'output window, operand 0']
    %10 = vsyncpa [#allocation6], 0
    %s11 = scalar_lea.sflag [#allocation6], 1
    %12 = vsyncpa %s11, 0
    %13 = vsyncpa [#allocation7], 0
    %s14 = scalar_lea.sflag [#allocation7], 1
    %15 = vsyncpa %s14, 0
    loop: start=0, step=1, limit=10
    $region2: #{watermelon_forward.1} parent=1 // loop_pre_header
      _
    $region3: #{watermelon_forward.1} parent=1 // loop_header
      %s17 = sphi 0, %s21
      %p18 = scmp.ge.s32.totalorder %s17, 10
      %s27 = sphi 0, %s29
      %s30 = sphi 0, %s27
      %s31 = sphi 0, %s30
      %s47 = sphi 0, %s31
      %s53 = sphi 0, %s55
      %s56 = sphi 0, %s53
      %s57 = sphi 0, %s56
      %s73 = sphi 0, %s57
    $region4: #{watermelon_forward.1} parent=1 // loop_header_branch
      %20 = sbr.rel (%p18) target = $region8
    $region5: #{watermelon_forward.1} parent=1 // loop_body
      %s22 = ssub.s32 %s17, 1
      %s23 = ssub.s32 %s17, 2
      %s24 = sadd.s32 %s17, 1
      %s25 = ssub.s32 %s17, %s24
      %p26 = scmp.eq.s32.totalorder %s25, 0
      %s28 = sadd.s32 %s27, 1
      %s29 = scalar_select %p26, %s27, %s28
      %p32 = pneg %p26
      %p33 = scmp.eq.s32.totalorder %s17, 7
      %p34 = por %p32, %p33
      %p35 = scmp.ne.s32.totalorder %s27, %s30
      %p36 = scmp.eq.s32.totalorder %s17, 0
      %p37 = por %p35, %p36
      %p38 = scmp.ne.s32.totalorder %s27, %s30
      %p39 = scmp.eq.s32.totalorder %s22, 7
      %p40 = por %p38, %p39
      %p41 = scmp.ne.s32.totalorder %s30, %s31
      %p42 = scmp.eq.s32.totalorder %s22, 0
      %p43 = por %p41, %p42
      %p44 = scmp.ne.s32.totalorder %s30, %s31
      %p45 = scmp.eq.s32.totalorder %s23, 7
      %p46 = por %p44, %p45
      %p48 = scmp.ne.s32.totalorder %s31, %s47
      %p49 = scmp.eq.s32.totalorder %s23, 0
      %p50 = por %p48, %p49
      %s51 = ssub.s32 %s17, %s24
      %p52 = scmp.eq.s32.totalorder %s51, 0
      %s54 = sadd.s32 %s53, 1
      %s55 = scalar_select %p52, %s53, %s54
      %p58 = pneg %p52
      %p59 = scmp.eq.s32.totalorder %s17, 7
      %p60 = por %p58, %p59
      %p61 = scmp.ne.s32.totalorder %s53, %s56
      %p62 = scmp.eq.s32.totalorder %s17, 0
      %p63 = por %p61, %p62
      %p64 = scmp.ne.s32.totalorder %s53, %s56
      %p65 = scmp.eq.s32.totalorder %s22, 7
      %p66 = por %p64, %p65
      %p67 = scmp.ne.s32.totalorder %s56, %s57
      %p68 = scmp.eq.s32.totalorder %s22, 0
      %p69 = por %p67, %p68
      %p70 = scmp.ne.s32.totalorder %s56, %s57
      %p71 = scmp.eq.s32.totalorder %s23, 7
      %p72 = por %p70, %p71
      %p74 = scmp.ne.s32.totalorder %s57, %s73
      %p75 = scmp.eq.s32.totalorder %s23, 0
      %p76 = por %p74, %p75
      %p77 = scmp.le.s32.totalorder 1, %s17
      %p78 = scmp.lt.s32.totalorder %s17, 9
      %p79 = pnand %p77, %p78
      %p80 = pneg %p79
      // Predicated region
      $region9: #{watermelon_forward.1} parent=5 // pred_check
        _
      $region10: #{watermelon_forward.1} parent=5 // pred_check_branch
        %82 = sbr.rel (%p79) target = $region12
      $region11: #{watermelon_forward.1} parent=5 // pred_region
        %s83 = ssub.s32 %s17, 1
      $region12: #{watermelon_forward.1} parent=5 // pred_fallthru
        _
      %p84 = scmp.lt.s32.totalorder %s17, 8
      // Predicated region
      $region13: #{watermelon_forward.1} parent=5 // pred_check
        %p85 = pneg %p84
      $region14: #{watermelon_forward.1} parent=5 // pred_check_branch
        %87 = sbr.rel (%p85) target = $region16
      $region15: #{watermelon_forward.1} parent=5 // pred_region
        // Predicated region
        $region17: #{watermelon_forward.1} parent=15 // pred_check
          %p88 = pneg %p37
        $region18: #{watermelon_forward.1} parent=15 // pred_check_branch
          %90 = sbr.rel (%p88) target = $region20
        $region19: #{watermelon_forward.1} parent=15 // pred_region
          %s91 = sand.u32 %s27, 1
          %s92 = scalar_lea.sflag [#allocation6], %s91
          %s93 = sand.u32 %s27, 1
          %s94 = smul.addr %s93, 4096
          %s95 = scalar_lea.vmem [#allocation5], %s94
          %s96 = smul.u32 512, %s17
          %98 = vsyncadd %s92, 0
          %s99 = smul.addr %s96, 8
          %s100 = scalar_lea.hbm %s2, %s99
          %s101 = sshll.u32 %s100, 4
          %s102 = int_to_ptr.hbm [resolvable:$true] %s101
          %s103 = sshll.u32 %s95, 4
          %s104 = int_to_ptr.vmem [resolvable:$true] %s103
          %109 = dma.hbm_to_vmem [thread:$0]  %s102, 65536, %s104, %s92, 128, 128, 8
        $region20: #{watermelon_forward.1} parent=15 // pred_fallthru
          _
      $region16: #{watermelon_forward.1} parent=5 // pred_fallthru
        _
      %p110 = scmp.le.s32.totalorder 1, %s17
      %p111 = scmp.lt.s32.totalorder %s17, 9
      %p112 = pnand %p110, %p111
      %p113 = pneg %p112
      // Predicated region
      $region21: #{watermelon_forward.1} parent=5 // pred_check
        _
      $region22: #{watermelon_forward.1} parent=5 // pred_check_branch
        %115 = sbr.rel (%p112) target = $region24
      $region23: #{watermelon_forward.1} parent=5 // pred_region
        %s116 = ssub.s32 %s17, 1
        %s117 = sand.u32 %s30, 1
        %s118 = scalar_lea.sflag [#allocation6], %s117
        %s119 = sand.u32 %s30, 1
        %s120 = smul.addr %s119, 4096
        %s121 = scalar_lea.vmem [#allocation5], %s120
        // Predicated region
        $region25: #{watermelon_forward.1} parent=23 // pred_check
          %p122 = pneg %p43
        $region26: #{watermelon_forward.1} parent=23 // pred_check_branch
          %124 = sbr.rel (%p122) target = $region28
        $region27: #{watermelon_forward.1} parent=23 // pred_region
          %126 = dma.done %s118, 65536
        $region28: #{watermelon_forward.1} parent=23 // pred_fallthru
          _
        %s127 = sand.u32 %s30, 1
        %s128 = scalar_lea.sflag [#allocation6], %s127
        %s129 = sand.u32 %s30, 1
        %s130 = smul.addr %s129, 4096
        %s131 = scalar_lea.vmem [#allocation5], %s130
        %p132 = pneg %p43
        %p133 = pneg %p40
        %p134 = pneg %p69
        %p135 = pneg %p66
        %s136 = sand.u32 %s56, 1
        %s137 = scalar_lea.sflag [#allocation7], %s136
        %s138 = sand.u32 %s56, 1
        %s139 = smul.addr %s138, 4096
        %s140 = scalar_lea.vmem [#allocation8], %s139
        %s141 = smul.u32 512, %s22
        %s142 = smul.u32 512, %s22
        %s143 = sld [smem:[#allocation3]]
        %s144 = sld [smem:[#allocation4]]
        %v145 = vld [vmem:[%s121] sm:$0xff]
        %v146 = vld [vmem:[%s121 + $0x8] sm:$0xff]
        %v147 = vld [vmem:[%s121 + $0x10] sm:$0xff]
        %v148 = vld [vmem:[%s121 + $0x18] sm:$0xff]
        %v149 = vld [vmem:[%s121 + $0x20] sm:$0xff]
        %v150 = vld [vmem:[%s121 + $0x28] sm:$0xff]
        %v151 = vld [vmem:[%s121 + $0x30] sm:$0xff]
        %v152 = vld [vmem:[%s121 + $0x38] sm:$0xff]
        %v153 = vld [vmem:[%s121 + $0x40] sm:$0xff]
        %v154 = vld [vmem:[%s121 + $0x48] sm:$0xff]
        %v155 = vld [vmem:[%s121 + $0x50] sm:$0xff]
        %v156 = vld [vmem:[%s121 + $0x58] sm:$0xff]
        %v157 = vld [vmem:[%s121 + $0x60] sm:$0xff]
        %v158 = vld [vmem:[%s121 + $0x68] sm:$0xff]
        %v159 = vld [vmem:[%s121 + $0x70] sm:$0xff]
        %v160 = vld [vmem:[%s121 + $0x78] sm:$0xff]
        %v161 = vld [vmem:[%s121 + $0x80] sm:$0xff]
        %v162 = vld [vmem:[%s121 + $0x88] sm:$0xff]
        %v163 = vld [vmem:[%s121 + $0x90] sm:$0xff]
        %v164 = vld [vmem:[%s121 + $0x98] sm:$0xff]
        %v165 = vld [vmem:[%s121 + $0xa0] sm:$0xff]
        %v166 = vld [vmem:[%s121 + $0xa8] sm:$0xff]
        %v167 = vld [vmem:[%s121 + $0xb0] sm:$0xff]
        %v168 = vld [vmem:[%s121 + $0xb8] sm:$0xff]
        %v169 = vld [vmem:[%s121 + $0xc0] sm:$0xff]
        %v170 = vld [vmem:[%s121 + $0xc8] sm:$0xff]
        %v171 = vld [vmem:[%s121 + $0xd0] sm:$0xff]
        %v172 = vld [vmem:[%s121 + $0xd8] sm:$0xff]
        %v173 = vld [vmem:[%s121 + $0xe0] sm:$0xff]
        %v174 = vld [vmem:[%s121 + $0xe8] sm:$0xff]
        %v175 = vld [vmem:[%s121 + $0xf0] sm:$0xff]
        %v176 = vld [vmem:[%s121 + $0xf8] sm:$0xff]
        %v177 = vld [vmem:[%s121 + $0x100] sm:$0xff]
        %v178 = vld [vmem:[%s121 + $0x108] sm:$0xff]
        %v179 = vld [vmem:[%s121 + $0x110] sm:$0xff]
        %v180 = vld [vmem:[%s121 + $0x118] sm:$0xff]
        %v181 = vld [vmem:[%s121 + $0x120] sm:$0xff]
        %v182 = vld [vmem:[%s121 + $0x128] sm:$0xff]
        %v183 = vld [vmem:[%s121 + $0x130] sm:$0xff]
        %v184 = vld [vmem:[%s121 + $0x138] sm:$0xff]
        %v185 = vld [vmem:[%s121 + $0x140] sm:$0xff]
        %v186 = vld [vmem:[%s121 + $0x148] sm:$0xff]
        %v187 = vld [vmem:[%s121 + $0x150] sm:$0xff]
        %v188 = vld [vmem:[%s121 + $0x158] sm:$0xff]
        %v189 = vld [vmem:[%s121 + $0x160] sm:$0xff]
        %v190 = vld [vmem:[%s121 + $0x168] sm:$0xff]
        %v191 = vld [vmem:[%s121 + $0x170] sm:$0xff]
        %v192 = vld [vmem:[%s121 + $0x178] sm:$0xff]
        %v193 = vld [vmem:[%s121 + $0x180] sm:$0xff]
        %v194 = vld [vmem:[%s121 + $0x188] sm:$0xff]
        %v195 = vld [vmem:[%s121 + $0x190] sm:$0xff]
        %v196 = vld [vmem:[%s121 + $0x198] sm:$0xff]
        %v197 = vld [vmem:[%s121 + $0x1a0] sm:$0xff]
        %v198 = vld [vmem:[%s121 + $0x1a8] sm:$0xff]
        %v199 = vld [vmem:[%s121 + $0x1b0] sm:$0xff]
        %v200 = vld [vmem:[%s121 + $0x1b8] sm:$0xff]
        %v201 = vld [vmem:[%s121 + $0x1c0] sm:$0xff]
        %v202 = vld [vmem:[%s121 + $0x1c8] sm:$0xff]
        %v203 = vld [vmem:[%s121 + $0x1d0] sm:$0xff]
        %v204 = vld [vmem:[%s121 + $0x1d8] sm:$0xff]
        %v205 = vld [vmem:[%s121 + $0x1e0] sm:$0xff]
        %v206 = vld [vmem:[%s121 + $0x1e8] sm:$0xff]
        %v207 = vld [vmem:[%s121 + $0x1f0] sm:$0xff]
        %v208 = vld [vmem:[%s121 + $0x1f8] sm:$0xff]
        %v209 = vld [vmem:[%s121 + $0x200] sm:$0xff]
        %v210 = vld [vmem:[%s121 + $0x208] sm:$0xff]
        %v211 = vld [vmem:[%s121 + $0x210] sm:$0xff]
        %v212 = vld [vmem:[%s121 + $0x218] sm:$0xff]
        %v213 = vld [vmem:[%s121 + $0x220] sm:$0xff]
        %v214 = vld [vmem:[%s121 + $0x228] sm:$0xff]
        %v215 = vld [vmem:[%s121 + $0x230] sm:$0xff]
        %v216 = vld [vmem:[%s121 + $0x238] sm:$0xff]
        %v217 = vld [vmem:[%s121 + $0x240] sm:$0xff]
        %v218 = vld [vmem:[%s121 + $0x248] sm:$0xff]
        %v219 = vld [vmem:[%s121 + $0x250] sm:$0xff]
        %v220 = vld [vmem:[%s121 + $0x258] sm:$0xff]
        %v221 = vld [vmem:[%s121 + $0x260] sm:$0xff]
        %v222 = vld [vmem:[%s121 + $0x268] sm:$0xff]
        %v223 = vld [vmem:[%s121 + $0x270] sm:$0xff]
        %v224 = vld [vmem:[%s121 + $0x278] sm:$0xff]
        %v225 = vld [vmem:[%s121 + $0x280] sm:$0xff]
        %v226 = vld [vmem:[%s121 + $0x288] sm:$0xff]
        %v227 = vld [vmem:[%s121 + $0x290] sm:$0xff]
        %v228 = vld [vmem:[%s121 + $0x298] sm:$0xff]
        %v229 = vld [vmem:[%s121 + $0x2a0] sm:$0xff]
        %v230 = vld [vmem:[%s121 + $0x2a8] sm:$0xff]
        %v231 = vld [vmem:[%s121 + $0x2b0] sm:$0xff]
        %v232 = vld [vmem:[%s121 + $0x2b8] sm:$0xff]
        %v233 = vld [vmem:[%s121 + $0x2c0] sm:$0xff]
        %v234 = vld [vmem:[%s121 + $0x2c8] sm:$0xff]
        %v235 = vld [vmem:[%s121 + $0x2d0] sm:$0xff]
        %v236 = vld [vmem:[%s121 + $0x2d8] sm:$0xff]
        %v237 = vld [vmem:[%s121 + $0x2e0] sm:$0xff]
        %v238 = vld [vmem:[%s121 + $0x2e8] sm:$0xff]
        %v239 = vld [vmem:[%s121 + $0x2f0] sm:$0xff]
        %v240 = vld [vmem:[%s121 + $0x2f8] sm:$0xff]
        %v241 = vld [vmem:[%s121 + $0x300] sm:$0xff]
        %v242 = vld [vmem:[%s121 + $0x308] sm:$0xff]
        %v243 = vld [vmem:[%s121 + $0x310] sm:$0xff]
        %v244 = vld [vmem:[%s121 + $0x318] sm:$0xff]
        %v245 = vld [vmem:[%s121 + $0x320] sm:$0xff]
        %v246 = vld [vmem:[%s121 + $0x328] sm:$0xff]
        %v247 = vld [vmem:[%s121 + $0x330] sm:$0xff]
        %v248 = vld [vmem:[%s121 + $0x338] sm:$0xff]
        %v249 = vld [vmem:[%s121 + $0x340] sm:$0xff]
        %v250 = vld [vmem:[%s121 + $0x348] sm:$0xff]
        %v251 = vld [vmem:[%s121 + $0x350] sm:$0xff]
        %v252 = vld [vmem:[%s121 + $0x358] sm:$0xff]
        %v253 = vld [vmem:[%s121 + $0x360] sm:$0xff]
        %v254 = vld [vmem:[%s121 + $0x368] sm:$0xff]
        %v255 = vld [vmem:[%s121 + $0x370] sm:$0xff]
        %v256 = vld [vmem:[%s121 + $0x378] sm:$0xff]
        %v257 = vld [vmem:[%s121 + $0x380] sm:$0xff]
        %v258 = vld [vmem:[%s121 + $0x388] sm:$0xff]
        %v259 = vld [vmem:[%s121 + $0x390] sm:$0xff]
        %v260 = vld [vmem:[%s121 + $0x398] sm:$0xff]
        %v261 = vld [vmem:[%s121 + $0x3a0] sm:$0xff]
        %v262 = vld [vmem:[%s121 + $0x3a8] sm:$0xff]
        %v263 = vld [vmem:[%s121 + $0x3b0] sm:$0xff]
        %v264 = vld [vmem:[%s121 + $0x3b8] sm:$0xff]
        %v265 = vld [vmem:[%s121 + $0x3c0] sm:$0xff]
        %v266 = vld [vmem:[%s121 + $0x3c8] sm:$0xff]
        %v267 = vld [vmem:[%s121 + $0x3d0] sm:$0xff]
        %v268 = vld [vmem:[%s121 + $0x3d8] sm:$0xff]
        %v269 = vld [vmem:[%s121 + $0x3e0] sm:$0xff]
        %v270 = vld [vmem:[%s121 + $0x3e8] sm:$0xff]
        %v271 = vld [vmem:[%s121 + $0x3f0] sm:$0xff]
        %v272 = vld [vmem:[%s121 + $0x3f8] sm:$0xff]
        %v273 = vld [vmem:[%s121 + $0x400] sm:$0xff]
        %v274 = vld [vmem:[%s121 + $0x408] sm:$0xff]
        %v275 = vld [vmem:[%s121 + $0x410] sm:$0xff]
        %v276 = vld [vmem:[%s121 + $0x418] sm:$0xff]
        %v277 = vld [vmem:[%s121 + $0x420] sm:$0xff]
        %v278 = vld [vmem:[%s121 + $0x428] sm:$0xff]
        %v279 = vld [vmem:[%s121 + $0x430] sm:$0xff]
        %v280 = vld [vmem:[%s121 + $0x438] sm:$0xff]
        %v281 = vld [vmem:[%s121 + $0x440] sm:$0xff]
        %v282 = vld [vmem:[%s121 + $0x448] sm:$0xff]
        %v283 = vld [vmem:[%s121 + $0x450] sm:$0xff]
        %v284 = vld [vmem:[%s121 + $0x458] sm:$0xff]
        %v285 = vld [vmem:[%s121 + $0x460] sm:$0xff]
        %v286 = vld [vmem:[%s121 + $0x468] sm:$0xff]
        %v287 = vld [vmem:[%s121 + $0x470] sm:$0xff]
        %v288 = vld [vmem:[%s121 + $0x478] sm:$0xff]
        %v289 = vld [vmem:[%s121 + $0x480] sm:$0xff]
        %v290 = vld [vmem:[%s121 + $0x488] sm:$0xff]
        %v291 = vld [vmem:[%s121 + $0x490] sm:$0xff]
        %v292 = vld [vmem:[%s121 + $0x498] sm:$0xff]
        %v293 = vld [vmem:[%s121 + $0x4a0] sm:$0xff]
        %v294 = vld [vmem:[%s121 + $0x4a8] sm:$0xff]
        %v295 = vld [vmem:[%s121 + $0x4b0] sm:$0xff]
        %v296 = vld [vmem:[%s121 + $0x4b8] sm:$0xff]
        %v297 = vld [vmem:[%s121 + $0x4c0] sm:$0xff]
        %v298 = vld [vmem:[%s121 + $0x4c8] sm:$0xff]
        %v299 = vld [vmem:[%s121 + $0x4d0] sm:$0xff]
        %v300 = vld [vmem:[%s121 + $0x4d8] sm:$0xff]
        %v301 = vld [vmem:[%s121 + $0x4e0] sm:$0xff]
        %v302 = vld [vmem:[%s121 + $0x4e8] sm:$0xff]
        %v303 = vld [vmem:[%s121 + $0x4f0] sm:$0xff]
        %v304 = vld [vmem:[%s121 + $0x4f8] sm:$0xff]
        %v305 = vld [vmem:[%s121 + $0x500] sm:$0xff]
        %v306 = vld [vmem:[%s121 + $0x508] sm:$0xff]
        %v307 = vld [vmem:[%s121 + $0x510] sm:$0xff]
        %v308 = vld [vmem:[%s121 + $0x518] sm:$0xff]
        %v309 = vld [vmem:[%s121 + $0x520] sm:$0xff]
        %v310 = vld [vmem:[%s121 + $0x528] sm:$0xff]
        %v311 = vld [vmem:[%s121 + $0x530] sm:$0xff]
        %v312 = vld [vmem:[%s121 + $0x538] sm:$0xff]
        %v313 = vld [vmem:[%s121 + $0x540] sm:$0xff]
        %v314 = vld [vmem:[%s121 + $0x548] sm:$0xff]
        %v315 = vld [vmem:[%s121 + $0x550] sm:$0xff]
        %v316 = vld [vmem:[%s121 + $0x558] sm:$0xff]
        %v317 = vld [vmem:[%s121 + $0x560] sm:$0xff]
        %v318 = vld [vmem:[%s121 + $0x568] sm:$0xff]
        %v319 = vld [vmem:[%s121 + $0x570] sm:$0xff]
        %v320 = vld [vmem:[%s121 + $0x578] sm:$0xff]
        %v321 = vld [vmem:[%s121 + $0x580] sm:$0xff]
        %v322 = vld [vmem:[%s121 + $0x588] sm:$0xff]
        %v323 = vld [vmem:[%s121 + $0x590] sm:$0xff]
        %v324 = vld [vmem:[%s121 + $0x598] sm:$0xff]
        %v325 = vld [vmem:[%s121 + $0x5a0] sm:$0xff]
        %v326 = vld [vmem:[%s121 + $0x5a8] sm:$0xff]
        %v327 = vld [vmem:[%s121 + $0x5b0] sm:$0xff]
        %v328 = vld [vmem:[%s121 + $0x5b8] sm:$0xff]
        %v329 = vld [vmem:[%s121 + $0x5c0] sm:$0xff]
        %v330 = vld [vmem:[%s121 + $0x5c8] sm:$0xff]
        %v331 = vld [vmem:[%s121 + $0x5d0] sm:$0xff]
        %v332 = vld [vmem:[%s121 + $0x5d8] sm:$0xff]
        %v333 = vld [vmem:[%s121 + $0x5e0] sm:$0xff]
        %v334 = vld [vmem:[%s121 + $0x5e8] sm:$0xff]
        %v335 = vld [vmem:[%s121 + $0x5f0] sm:$0xff]
        %v336 = vld [vmem:[%s121 + $0x5f8] sm:$0xff]
        %v337 = vld [vmem:[%s121 + $0x600] sm:$0xff]
        %v338 = vld [vmem:[%s121 + $0x608] sm:$0xff]
        %v339 = vld [vmem:[%s121 + $0x610] sm:$0xff]
        %v340 = vld [vmem:[%s121 + $0x618] sm:$0xff]
        %v341 = vld [vmem:[%s121 + $0x620] sm:$0xff]
        %v342 = vld [vmem:[%s121 + $0x628] sm:$0xff]
        %v343 = vld [vmem:[%s121 + $0x630] sm:$0xff]
        %v344 = vld [vmem:[%s121 + $0x638] sm:$0xff]
        %v345 = vld [vmem:[%s121 + $0x640] sm:$0xff]
        %v346 = vld [vmem:[%s121 + $0x648] sm:$0xff]
        %v347 = vld [vmem:[%s121 + $0x650] sm:$0xff]
        %v348 = vld [vmem:[%s121 + $0x658] sm:$0xff]
        %v349 = vld [vmem:[%s121 + $0x660] sm:$0xff]
        %v350 = vld [vmem:[%s121 + $0x668] sm:$0xff]
        %v351 = vld [vmem:[%s121 + $0x670] sm:$0xff]
        %v352 = vld [vmem:[%s121 + $0x678] sm:$0xff]
        %v353 = vld [vmem:[%s121 + $0x680] sm:$0xff]
        %v354 = vld [vmem:[%s121 + $0x688] sm:$0xff]
        %v355 = vld [vmem:[%s121 + $0x690] sm:$0xff]
        %v356 = vld [vmem:[%s121 + $0x698] sm:$0xff]
        %v357 = vld [vmem:[%s121 + $0x6a0] sm:$0xff]
        %v358 = vld [vmem:[%s121 + $0x6a8] sm:$0xff]
        %v359 = vld [vmem:[%s121 + $0x6b0] sm:$0xff]
        %v360 = vld [vmem:[%s121 + $0x6b8] sm:$0xff]
        %v361 = vld [vmem:[%s121 + $0x6c0] sm:$0xff]
        %v362 = vld [vmem:[%s121 + $0x6c8] sm:$0xff]
        %v363 = vld [vmem:[%s121 + $0x6d0] sm:$0xff]
        %v364 = vld [vmem:[%s121 + $0x6d8] sm:$0xff]
        %v365 = vld [vmem:[%s121 + $0x6e0] sm:$0xff]
        %v366 = vld [vmem:[%s121 + $0x6e8] sm:$0xff]
        %v367 = vld [vmem:[%s121 + $0x6f0] sm:$0xff]
        %v368 = vld [vmem:[%s121 + $0x6f8] sm:$0xff]
        %v369 = vld [vmem:[%s121 + $0x700] sm:$0xff]
        %v370 = vld [vmem:[%s121 + $0x708] sm:$0xff]
        %v371 = vld [vmem:[%s121 + $0x710] sm:$0xff]
        %v372 = vld [vmem:[%s121 + $0x718] sm:$0xff]
        %v373 = vld [vmem:[%s121 + $0x720] sm:$0xff]
        %v374 = vld [vmem:[%s121 + $0x728] sm:$0xff]
        %v375 = vld [vmem:[%s121 + $0x730] sm:$0xff]
        %v376 = vld [vmem:[%s121 + $0x738] sm:$0xff]
        %v377 = vld [vmem:[%s121 + $0x740] sm:$0xff]
        %v378 = vld [vmem:[%s121 + $0x748] sm:$0xff]
        %v379 = vld [vmem:[%s121 + $0x750] sm:$0xff]
        %v380 = vld [vmem:[%s121 + $0x758] sm:$0xff]
        %v381 = vld [vmem:[%s121 + $0x760] sm:$0xff]
        %v382 = vld [vmem:[%s121 + $0x768] sm:$0xff]
        %v383 = vld [vmem:[%s121 + $0x770] sm:$0xff]
        %v384 = vld [vmem:[%s121 + $0x778] sm:$0xff]
        %v385 = vld [vmem:[%s121 + $0x780] sm:$0xff]
        %v386 = vld [vmem:[%s121 + $0x788] sm:$0xff]
        %v387 = vld [vmem:[%s121 + $0x790] sm:$0xff]
        %v388 = vld [vmem:[%s121 + $0x798] sm:$0xff]
        %v389 = vld [vmem:[%s121 + $0x7a0] sm:$0xff]
        %v390 = vld [vmem:[%s121 + $0x7a8] sm:$0xff]
        %v391 = vld [vmem:[%s121 + $0x7b0] sm:$0xff]
        %v392 = vld [vmem:[%s121 + $0x7b8] sm:$0xff]
        %v393 = vld [vmem:[%s121 + $0x7c0] sm:$0xff]
        %v394 = vld [vmem:[%s121 + $0x7c8] sm:$0xff]
        %v395 = vld [vmem:[%s121 + $0x7d0] sm:$0xff]
        %v396 = vld [vmem:[%s121 + $0x7d8] sm:$0xff]
        %v397 = vld [vmem:[%s121 + $0x7e0] sm:$0xff]
        %v398 = vld [vmem:[%s121 + $0x7e8] sm:$0xff]
        %v399 = vld [vmem:[%s121 + $0x7f0] sm:$0xff]
        %v400 = vld [vmem:[%s121 + $0x7f8] sm:$0xff]
        %v401 = vld [vmem:[%s121 + $0x800] sm:$0xff]
        %v402 = vld [vmem:[%s121 + $0x808] sm:$0xff]
        %v403 = vld [vmem:[%s121 + $0x810] sm:$0xff]
        %v404 = vld [vmem:[%s121 + $0x818] sm:$0xff]
        %v405 = vld [vmem:[%s121 + $0x820] sm:$0xff]
        %v406 = vld [vmem:[%s121 + $0x828] sm:$0xff]
        %v407 = vld [vmem:[%s121 + $0x830] sm:$0xff]
        %v408 = vld [vmem:[%s121 + $0x838] sm:$0xff]
        %v409 = vld [vmem:[%s121 + $0x840] sm:$0xff]
        %v410 = vld [vmem:[%s121 + $0x848] sm:$0xff]
        %v411 = vld [vmem:[%s121 + $0x850] sm:$0xff]
        %v412 = vld [vmem:[%s121 + $0x858] sm:$0xff]
        %v413 = vld [vmem:[%s121 + $0x860] sm:$0xff]
        %v414 = vld [vmem:[%s121 + $0x868] sm:$0xff]
        %v415 = vld [vmem:[%s121 + $0x870] sm:$0xff]
        %v416 = vld [vmem:[%s121 + $0x878] sm:$0xff]
        %v417 = vld [vmem:[%s121 + $0x880] sm:$0xff]
        %v418 = vld [vmem:[%s121 + $0x888] sm:$0xff]
        %v419 = vld [vmem:[%s121 + $0x890] sm:$0xff]
        %v420 = vld [vmem:[%s121 + $0x898] sm:$0xff]
        %v421 = vld [vmem:[%s121 + $0x8a0] sm:$0xff]
        %v422 = vld [vmem:[%s121 + $0x8a8] sm:$0xff]
        %v423 = vld [vmem:[%s121 + $0x8b0] sm:$0xff]
        %v424 = vld [vmem:[%s121 + $0x8b8] sm:$0xff]
        %v425 = vld [vmem:[%s121 + $0x8c0] sm:$0xff]
        %v426 = vld [vmem:[%s121 + $0x8c8] sm:$0xff]
        %v427 = vld [vmem:[%s121 + $0x8d0] sm:$0xff]
        %v428 = vld [vmem:[%s121 + $0x8d8] sm:$0xff]
        %v429 = vld [vmem:[%s121 + $0x8e0] sm:$0xff]
        %v430 = vld [vmem:[%s121 + $0x8e8] sm:$0xff]
        %v431 = vld [vmem:[%s121 + $0x8f0] sm:$0xff]
        %v432 = vld [vmem:[%s121 + $0x8f8] sm:$0xff]
        %v433 = vld [vmem:[%s121 + $0x900] sm:$0xff]
        %v434 = vld [vmem:[%s121 + $0x908] sm:$0xff]
        %v435 = vld [vmem:[%s121 + $0x910] sm:$0xff]
        %v436 = vld [vmem:[%s121 + $0x918] sm:$0xff]
        %v437 = vld [vmem:[%s121 + $0x920] sm:$0xff]
        %v438 = vld [vmem:[%s121 + $0x928] sm:$0xff]
        %v439 = vld [vmem:[%s121 + $0x930] sm:$0xff]
        %v440 = vld [vmem:[%s121 + $0x938] sm:$0xff]
        %v441 = vld [vmem:[%s121 + $0x940] sm:$0xff]
        %v442 = vld [vmem:[%s121 + $0x948] sm:$0xff]
        %v443 = vld [vmem:[%s121 + $0x950] sm:$0xff]
        %v444 = vld [vmem:[%s121 + $0x958] sm:$0xff]
        %v445 = vld [vmem:[%s121 + $0x960] sm:$0xff]
        %v446 = vld [vmem:[%s121 + $0x968] sm:$0xff]
        %v447 = vld [vmem:[%s121 + $0x970] sm:$0xff]
        %v448 = vld [vmem:[%s121 + $0x978] sm:$0xff]
        %v449 = vld [vmem:[%s121 + $0x980] sm:$0xff]
        %v450 = vld [vmem:[%s121 + $0x988] sm:$0xff]
        %v451 = vld [vmem:[%s121 + $0x990] sm:$0xff]
        %v452 = vld [vmem:[%s121 + $0x998] sm:$0xff]
        %v453 = vld [vmem:[%s121 + $0x9a0] sm:$0xff]
        %v454 = vld [vmem:[%s121 + $0x9a8] sm:$0xff]
        %v455 = vld [vmem:[%s121 + $0x9b0] sm:$0xff]
        %v456 = vld [vmem:[%s121 + $0x9b8] sm:$0xff]
        %v457 = vld [vmem:[%s121 + $0x9c0] sm:$0xff]
        %v458 = vld [vmem:[%s121 + $0x9c8] sm:$0xff]
        %v459 = vld [vmem:[%s121 + $0x9d0] sm:$0xff]
        %v460 = vld [vmem:[%s121 + $0x9d8] sm:$0xff]
        %v461 = vld [vmem:[%s121 + $0x9e0] sm:$0xff]
        %v462 = vld [vmem:[%s121 + $0x9e8] sm:$0xff]
        %v463 = vld [vmem:[%s121 + $0x9f0] sm:$0xff]
        %v464 = vld [vmem:[%s121 + $0x9f8] sm:$0xff]
        %v465 = vld [vmem:[%s121 + $0xa00] sm:$0xff]
        %v466 = vld [vmem:[%s121 + $0xa08] sm:$0xff]
        %v467 = vld [vmem:[%s121 + $0xa10] sm:$0xff]
        %v468 = vld [vmem:[%s121 + $0xa18] sm:$0xff]
        %v469 = vld [vmem:[%s121 + $0xa20] sm:$0xff]
        %v470 = vld [vmem:[%s121 + $0xa28] sm:$0xff]
        %v471 = vld [vmem:[%s121 + $0xa30] sm:$0xff]
        %v472 = vld [vmem:[%s121 + $0xa38] sm:$0xff]
        %v473 = vld [vmem:[%s121 + $0xa40] sm:$0xff]
        %v474 = vld [vmem:[%s121 + $0xa48] sm:$0xff]
        %v475 = vld [vmem:[%s121 + $0xa50] sm:$0xff]
        %v476 = vld [vmem:[%s121 + $0xa58] sm:$0xff]
        %v477 = vld [vmem:[%s121 + $0xa60] sm:$0xff]
        %v478 = vld [vmem:[%s121 + $0xa68] sm:$0xff]
        %v479 = vld [vmem:[%s121 + $0xa70] sm:$0xff]
        %v480 = vld [vmem:[%s121 + $0xa78] sm:$0xff]
        %v481 = vld [vmem:[%s121 + $0xa80] sm:$0xff]
        %v482 = vld [vmem:[%s121 + $0xa88] sm:$0xff]
        %v483 = vld [vmem:[%s121 + $0xa90] sm:$0xff]
        %v484 = vld [vmem:[%s121 + $0xa98] sm:$0xff]
        %v485 = vld [vmem:[%s121 + $0xaa0] sm:$0xff]
        %v486 = vld [vmem:[%s121 + $0xaa8] sm:$0xff]
        %v487 = vld [vmem:[%s121 + $0xab0] sm:$0xff]
        %v488 = vld [vmem:[%s121 + $0xab8] sm:$0xff]
        %v489 = vld [vmem:[%s121 + $0xac0] sm:$0xff]
        %v490 = vld [vmem:[%s121 + $0xac8] sm:$0xff]
        %v491 = vld [vmem:[%s121 + $0xad0] sm:$0xff]
        %v492 = vld [vmem:[%s121 + $0xad8] sm:$0xff]
        %v493 = vld [vmem:[%s121 + $0xae0] sm:$0xff]
        %v494 = vld [vmem:[%s121 + $0xae8] sm:$0xff]
        %v495 = vld [vmem:[%s121 + $0xaf0] sm:$0xff]
        %v496 = vld [vmem:[%s121 + $0xaf8] sm:$0xff]
        %v497 = vld [vmem:[%s121 + $0xb00] sm:$0xff]
        %v498 = vld [vmem:[%s121 + $0xb08] sm:$0xff]
        %v499 = vld [vmem:[%s121 + $0xb10] sm:$0xff]
        %v500 = vld [vmem:[%s121 + $0xb18] sm:$0xff]
        %v501 = vld [vmem:[%s121 + $0xb20] sm:$0xff]
        %v502 = vld [vmem:[%s121 + $0xb28] sm:$0xff]
        %v503 = vld [vmem:[%s121 + $0xb30] sm:$0xff]
        %v504 = vld [vmem:[%s121 + $0xb38] sm:$0xff]
        %v505 = vld [vmem:[%s121 + $0xb40] sm:$0xff]
        %v506 = vld [vmem:[%s121 + $0xb48] sm:$0xff]
        %v507 = vld [vmem:[%s121 + $0xb50] sm:$0xff]
        %v508 = vld [vmem:[%s121 + $0xb58] sm:$0xff]
        %v509 = vld [vmem:[%s121 + $0xb60] sm:$0xff]
        %v510 = vld [vmem:[%s121 + $0xb68] sm:$0xff]
        %v511 = vld [vmem:[%s121 + $0xb70] sm:$0xff]
        %v512 = vld [vmem:[%s121 + $0xb78] sm:$0xff]
        %v513 = vld [vmem:[%s121 + $0xb80] sm:$0xff]
        %v514 = vld [vmem:[%s121 + $0xb88] sm:$0xff]
        %v515 = vld [vmem:[%s121 + $0xb90] sm:$0xff]
        %v516 = vld [vmem:[%s121 + $0xb98] sm:$0xff]
        %v517 = vld [vmem:[%s121 + $0xba0] sm:$0xff]
        %v518 = vld [vmem:[%s121 + $0xba8] sm:$0xff]
        %v519 = vld [vmem:[%s121 + $0xbb0] sm:$0xff]
        %v520 = vld [vmem:[%s121 + $0xbb8] sm:$0xff]
        %v521 = vld [vmem:[%s121 + $0xbc0] sm:$0xff]
        %v522 = vld [vmem:[%s121 + $0xbc8] sm:$0xff]
        %v523 = vld [vmem:[%s121 + $0xbd0] sm:$0xff]
        %v524 = vld [vmem:[%s121 + $0xbd8] sm:$0xff]
        %v525 = vld [vmem:[%s121 + $0xbe0] sm:$0xff]
        %v526 = vld [vmem:[%s121 + $0xbe8] sm:$0xff]
        %v527 = vld [vmem:[%s121 + $0xbf0] sm:$0xff]
        %v528 = vld [vmem:[%s121 + $0xbf8] sm:$0xff]
        %v529 = vld [vmem:[%s121 + $0xc00] sm:$0xff]
        %v530 = vld [vmem:[%s121 + $0xc08] sm:$0xff]
        %v531 = vld [vmem:[%s121 + $0xc10] sm:$0xff]
        %v532 = vld [vmem:[%s121 + $0xc18] sm:$0xff]
        %v533 = vld [vmem:[%s121 + $0xc20] sm:$0xff]
        %v534 = vld [vmem:[%s121 + $0xc28] sm:$0xff]
        %v535 = vld [vmem:[%s121 + $0xc30] sm:$0xff]
        %v536 = vld [vmem:[%s121 + $0xc38] sm:$0xff]
        %v537 = vld [vmem:[%s121 + $0xc40] sm:$0xff]
        %v538 = vld [vmem:[%s121 + $0xc48] sm:$0xff]
        %v539 = vld [vmem:[%s121 + $0xc50] sm:$0xff]
        %v540 = vld [vmem:[%s121 + $0xc58] sm:$0xff]
        %v541 = vld [vmem:[%s121 + $0xc60] sm:$0xff]
        %v542 = vld [vmem:[%s121 + $0xc68] sm:$0xff]
        %v543 = vld [vmem:[%s121 + $0xc70] sm:$0xff]
        %v544 = vld [vmem:[%s121 + $0xc78] sm:$0xff]
        %v545 = vld [vmem:[%s121 + $0xc80] sm:$0xff]
        %v546 = vld [vmem:[%s121 + $0xc88] sm:$0xff]
        %v547 = vld [vmem:[%s121 + $0xc90] sm:$0xff]
        %v548 = vld [vmem:[%s121 + $0xc98] sm:$0xff]
        %v549 = vld [vmem:[%s121 + $0xca0] sm:$0xff]
        %v550 = vld [vmem:[%s121 + $0xca8] sm:$0xff]
        %v551 = vld [vmem:[%s121 + $0xcb0] sm:$0xff]
        %v552 = vld [vmem:[%s121 + $0xcb8] sm:$0xff]
        %v553 = vld [vmem:[%s121 + $0xcc0] sm:$0xff]
        %v554 = vld [vmem:[%s121 + $0xcc8] sm:$0xff]
        %v555 = vld [vmem:[%s121 + $0xcd0] sm:$0xff]
        %v556 = vld [vmem:[%s121 + $0xcd8] sm:$0xff]
        %v557 = vld [vmem:[%s121 + $0xce0] sm:$0xff]
        %v558 = vld [vmem:[%s121 + $0xce8] sm:$0xff]
        %v559 = vld [vmem:[%s121 + $0xcf0] sm:$0xff]
        %v560 = vld [vmem:[%s121 + $0xcf8] sm:$0xff]
        %v561 = vld [vmem:[%s121 + $0xd00] sm:$0xff]
        %v562 = vld [vmem:[%s121 + $0xd08] sm:$0xff]
        %v563 = vld [vmem:[%s121 + $0xd10] sm:$0xff]
        %v564 = vld [vmem:[%s121 + $0xd18] sm:$0xff]
        %v565 = vld [vmem:[%s121 + $0xd20] sm:$0xff]
        %v566 = vld [vmem:[%s121 + $0xd28] sm:$0xff]
        %v567 = vld [vmem:[%s121 + $0xd30] sm:$0xff]
        %v568 = vld [vmem:[%s121 + $0xd38] sm:$0xff]
        %v569 = vld [vmem:[%s121 + $0xd40] sm:$0xff]
        %v570 = vld [vmem:[%s121 + $0xd48] sm:$0xff]
        %v571 = vld [vmem:[%s121 + $0xd50] sm:$0xff]
        %v572 = vld [vmem:[%s121 + $0xd58] sm:$0xff]
        %v573 = vld [vmem:[%s121 + $0xd60] sm:$0xff]
        %v574 = vld [vmem:[%s121 + $0xd68] sm:$0xff]
        %v575 = vld [vmem:[%s121 + $0xd70] sm:$0xff]
        %v576 = vld [vmem:[%s121 + $0xd78] sm:$0xff]
        %v577 = vld [vmem:[%s121 + $0xd80] sm:$0xff]
        %v578 = vld [vmem:[%s121 + $0xd88] sm:$0xff]
        %v579 = vld [vmem:[%s121 + $0xd90] sm:$0xff]
        %v580 = vld [vmem:[%s121 + $0xd98] sm:$0xff]
        %v581 = vld [vmem:[%s121 + $0xda0] sm:$0xff]
        %v582 = vld [vmem:[%s121 + $0xda8] sm:$0xff]
        %v583 = vld [vmem:[%s121 + $0xdb0] sm:$0xff]
        %v584 = vld [vmem:[%s121 + $0xdb8] sm:$0xff]
        %v585 = vld [vmem:[%s121 + $0xdc0] sm:$0xff]
        %v586 = vld [vmem:[%s121 + $0xdc8] sm:$0xff]
        %v587 = vld [vmem:[%s121 + $0xdd0] sm:$0xff]
        %v588 = vld [vmem:[%s121 + $0xdd8] sm:$0xff]
        %v589 = vld [vmem:[%s121 + $0xde0] sm:$0xff]
        %v590 = vld [vmem:[%s121 + $0xde8] sm:$0xff]
        %v591 = vld [vmem:[%s121 + $0xdf0] sm:$0xff]
        %v592 = vld [vmem:[%s121 + $0xdf8] sm:$0xff]
        %v593 = vld [vmem:[%s121 + $0xe00] sm:$0xff]
        %v594 = vld [vmem:[%s121 + $0xe08] sm:$0xff]
        %v595 = vld [vmem:[%s121 + $0xe10] sm:$0xff]
        %v596 = vld [vmem:[%s121 + $0xe18] sm:$0xff]
        %v597 = vld [vmem:[%s121 + $0xe20] sm:$0xff]
        %v598 = vld [vmem:[%s121 + $0xe28] sm:$0xff]
        %v599 = vld [vmem:[%s121 + $0xe30] sm:$0xff]
        %v600 = vld [vmem:[%s121 + $0xe38] sm:$0xff]
        %v601 = vld [vmem:[%s121 + $0xe40] sm:$0xff]
        %v602 = vld [vmem:[%s121 + $0xe48] sm:$0xff]
        %v603 = vld [vmem:[%s121 + $0xe50] sm:$0xff]
        %v604 = vld [vmem:[%s121 + $0xe58] sm:$0xff]
        %v605 = vld [vmem:[%s121 + $0xe60] sm:$0xff]
        %v606 = vld [vmem:[%s121 + $0xe68] sm:$0xff]
        %v607 = vld [vmem:[%s121 + $0xe70] sm:$0xff]
        %v608 = vld [vmem:[%s121 + $0xe78] sm:$0xff]
        %v609 = vld [vmem:[%s121 + $0xe80] sm:$0xff]
        %v610 = vld [vmem:[%s121 + $0xe88] sm:$0xff]
        %v611 = vld [vmem:[%s121 + $0xe90] sm:$0xff]
        %v612 = vld [vmem:[%s121 + $0xe98] sm:$0xff]
        %v613 = vld [vmem:[%s121 + $0xea0] sm:$0xff]
        %v614 = vld [vmem:[%s121 + $0xea8] sm:$0xff]
        %v615 = vld [vmem:[%s121 + $0xeb0] sm:$0xff]
        %v616 = vld [vmem:[%s121 + $0xeb8] sm:$0xff]
        %v617 = vld [vmem:[%s121 + $0xec0] sm:$0xff]
        %v618 = vld [vmem:[%s121 + $0xec8] sm:$0xff]
        %v619 = vld [vmem:[%s121 + $0xed0] sm:$0xff]
        %v620 = vld [vmem:[%s121 + $0xed8] sm:$0xff]
        %v621 = vld [vmem:[%s121 + $0xee0] sm:$0xff]
        %v622 = vld [vmem:[%s121 + $0xee8] sm:$0xff]
        %v623 = vld [vmem:[%s121 + $0xef0] sm:$0xff]
        %v624 = vld [vmem:[%s121 + $0xef8] sm:$0xff]
        %v625 = vld [vmem:[%s121 + $0xf00] sm:$0xff]
        %v626 = vld [vmem:[%s121 + $0xf08] sm:$0xff]
        %v627 = vld [vmem:[%s121 + $0xf10] sm:$0xff]
        %v628 = vld [vmem:[%s121 + $0xf18] sm:$0xff]
        %v629 = vld [vmem:[%s121 + $0xf20] sm:$0xff]
        %v630 = vld [vmem:[%s121 + $0xf28] sm:$0xff]
        %v631 = vld [vmem:[%s121 + $0xf30] sm:$0xff]
        %v632 = vld [vmem:[%s121 + $0xf38] sm:$0xff]
        %v633 = vld [vmem:[%s121 + $0xf40] sm:$0xff]
        %v634 = vld [vmem:[%s121 + $0xf48] sm:$0xff]
        %v635 = vld [vmem:[%s121 + $0xf50] sm:$0xff]
        %v636 = vld [vmem:[%s121 + $0xf58] sm:$0xff]
        %v637 = vld [vmem:[%s121 + $0xf60] sm:$0xff]
        %v638 = vld [vmem:[%s121 + $0xf68] sm:$0xff]
        %v639 = vld [vmem:[%s121 + $0xf70] sm:$0xff]
        %v640 = vld [vmem:[%s121 + $0xf78] sm:$0xff]
        %v641 = vld [vmem:[%s121 + $0xf80] sm:$0xff]
        %v642 = vld [vmem:[%s121 + $0xf88] sm:$0xff]
        %v643 = vld [vmem:[%s121 + $0xf90] sm:$0xff]
        %v644 = vld [vmem:[%s121 + $0xf98] sm:$0xff]
        %v645 = vld [vmem:[%s121 + $0xfa0] sm:$0xff]
        %v646 = vld [vmem:[%s121 + $0xfa8] sm:$0xff]
        %v647 = vld [vmem:[%s121 + $0xfb0] sm:$0xff]
        %v648 = vld [vmem:[%s121 + $0xfb8] sm:$0xff]
        %v649 = vld [vmem:[%s121 + $0xfc0] sm:$0xff]
        %v650 = vld [vmem:[%s121 + $0xfc8] sm:$0xff]
        %v651 = vld [vmem:[%s121 + $0xfd0] sm:$0xff]
        %v652 = vld [vmem:[%s121 + $0xfd8] sm:$0xff]
        %v653 = vld [vmem:[%s121 + $0xfe0] sm:$0xff]
        %v654 = vld [vmem:[%s121 + $0xfe8] sm:$0xff]
        %v655 = vld [vmem:[%s121 + $0xff0] sm:$0xff]
        %v656 = vld [vmem:[%s121 + $0xff8] sm:$0xff]
        %v657 = vstv %s143
        %v658 = vmul.f32 %v145, %v657
        %v659 = vmul.f32 %v146, %v657
        %v660 = vmul.f32 %v147, %v657
        %v661 = vmul.f32 %v148, %v657
        %v662 = vmul.f32 %v149, %v657
        %v663 = vmul.f32 %v150, %v657
        %v664 = vmul.f32 %v151, %v657
        %v665 = vmul.f32 %v152, %v657
        %v666 = vmul.f32 %v153, %v657
        %v667 = vmul.f32 %v154, %v657
        %v668 = vmul.f32 %v155, %v657
        %v669 = vmul.f32 %v156, %v657
        %v670 = vmul.f32 %v157, %v657
        %v671 = vmul.f32 %v158, %v657
        %v672 = vmul.f32 %v159, %v657
        %v673 = vmul.f32 %v160, %v657
        %v674 = vmul.f32 %v161, %v657
        %v675 = vmul.f32 %v162, %v657
        %v676 = vmul.f32 %v163, %v657
        %v677 = vmul.f32 %v164, %v657
        %v678 = vmul.f32 %v165, %v657
        %v679 = vmul.f32 %v166, %v657
        %v680 = vmul.f32 %v167, %v657
        %v681 = vmul.f32 %v168, %v657
        %v682 = vmul.f32 %v169, %v657
        %v683 = vmul.f32 %v170, %v657
        %v684 = vmul.f32 %v171, %v657
        %v685 = vmul.f32 %v172, %v657
        %v686 = vmul.f32 %v173, %v657
        %v687 = vmul.f32 %v174, %v657
        %v688 = vmul.f32 %v175, %v657
        %v689 = vmul.f32 %v176, %v657
        %v690 = vmul.f32 %v177, %v657
        %v691 = vmul.f32 %v178, %v657
        %v692 = vmul.f32 %v179, %v657
        %v693 = vmul.f32 %v180, %v657
        %v694 = vmul.f32 %v181, %v657
        %v695 = vmul.f32 %v182, %v657
        %v696 = vmul.f32 %v183, %v657
        %v697 = vmul.f32 %v184, %v657
        %v698 = vmul.f32 %v185, %v657
        %v699 = vmul.f32 %v186, %v657
        %v700 = vmul.f32 %v187, %v657
        %v701 = vmul.f32 %v188, %v657
        %v702 = vmul.f32 %v189, %v657
        %v703 = vmul.f32 %v190, %v657
        %v704 = vmul.f32 %v191, %v657
        %v705 = vmul.f32 %v192, %v657
        %v706 = vmul.f32 %v193, %v657
        %v707 = vmul.f32 %v194, %v657
        %v708 = vmul.f32 %v195, %v657
        %v709 = vmul.f32 %v196, %v657
        %v710 = vmul.f32 %v197, %v657
        %v711 = vmul.f32 %v198, %v657
        %v712 = vmul.f32 %v199, %v657
        %v713 = vmul.f32 %v200, %v657
        %v714 = vmul.f32 %v201, %v657
        %v715 = vmul.f32 %v202, %v657
        %v716 = vmul.f32 %v203, %v657
        %v717 = vmul.f32 %v204, %v657
        %v718 = vmul.f32 %v205, %v657
        %v719 = vmul.f32 %v206, %v657
        %v720 = vmul.f32 %v207, %v657
        %v721 = vmul.f32 %v208, %v657
        %v722 = vmul.f32 %v209, %v657
        %v723 = vmul.f32 %v210, %v657
        %v724 = vmul.f32 %v211, %v657
        %v725 = vmul.f32 %v212, %v657
        %v726 = vmul.f32 %v213, %v657
        %v727 = vmul.f32 %v214, %v657
        %v728 = vmul.f32 %v215, %v657
        %v729 = vmul.f32 %v216, %v657
        %v730 = vmul.f32 %v217, %v657
        %v731 = vmul.f32 %v218, %v657
        %v732 = vmul.f32 %v219, %v657
        %v733 = vmul.f32 %v220, %v657
        %v734 = vmul.f32 %v221, %v657
        %v735 = vmul.f32 %v222, %v657
        %v736 = vmul.f32 %v223, %v657
        %v737 = vmul.f32 %v224, %v657
        %v738 = vmul.f32 %v225, %v657
        %v739 = vmul.f32 %v226, %v657
        %v740 = vmul.f32 %v227, %v657
        %v741 = vmul.f32 %v228, %v657
        %v742 = vmul.f32 %v229, %v657
        %v743 = vmul.f32 %v230, %v657
        %v744 = vmul.f32 %v231, %v657
        %v745 = vmul.f32 %v232, %v657
        %v746 = vmul.f32 %v233, %v657
        %v747 = vmul.f32 %v234, %v657
        %v748 = vmul.f32 %v235, %v657
        %v749 = vmul.f32 %v236, %v657
        %v750 = vmul.f32 %v237, %v657
        %v751 = vmul.f32 %v238, %v657
        %v752 = vmul.f32 %v239, %v657
        %v753 = vmul.f32 %v240, %v657
        %v754 = vmul.f32 %v241, %v657
        %v755 = vmul.f32 %v242, %v657
        %v756 = vmul.f32 %v243, %v657
        %v757 = vmul.f32 %v244, %v657
        %v758 = vmul.f32 %v245, %v657
        %v759 = vmul.f32 %v246, %v657
        %v760 = vmul.f32 %v247, %v657
        %v761 = vmul.f32 %v248, %v657
        %v762 = vmul.f32 %v249, %v657
        %v763 = vmul.f32 %v250, %v657
        %v764 = vmul.f32 %v251, %v657
        %v765 = vmul.f32 %v252, %v657
        %v766 = vmul.f32 %v253, %v657
        %v767 = vmul.f32 %v254, %v657
        %v768 = vmul.f32 %v255, %v657
        %v769 = vmul.f32 %v256, %v657
        %v770 = vmul.f32 %v257, %v657
        %v771 = vmul.f32 %v258, %v657
        %v772 = vmul.f32 %v259, %v657
        %v773 = vmul.f32 %v260, %v657
        %v774 = vmul.f32 %v261, %v657
        %v775 = vmul.f32 %v262, %v657
        %v776 = vmul.f32 %v263, %v657
        %v777 = vmul.f32 %v264, %v657
        %v778 = vmul.f32 %v265, %v657
        %v779 = vmul.f32 %v266, %v657
        %v780 = vmul.f32 %v267, %v657
        %v781 = vmul.f32 %v268, %v657
        %v782 = vmul.f32 %v269, %v657
        %v783 = vmul.f32 %v270, %v657
        %v784 = vmul.f32 %v271, %v657
        %v785 = vmul.f32 %v272, %v657
        %v786 = vmul.f32 %v273, %v657
        %v787 = vmul.f32 %v274, %v657
        %v788 = vmul.f32 %v275, %v657
        %v789 = vmul.f32 %v276, %v657
        %v790 = vmul.f32 %v277, %v657
        %v791 = vmul.f32 %v278, %v657
        %v792 = vmul.f32 %v279, %v657
        %v793 = vmul.f32 %v280, %v657
        %v794 = vmul.f32 %v281, %v657
        %v795 = vmul.f32 %v282, %v657
        %v796 = vmul.f32 %v283, %v657
        %v797 = vmul.f32 %v284, %v657
        %v798 = vmul.f32 %v285, %v657
        %v799 = vmul.f32 %v286, %v657
        %v800 = vmul.f32 %v287, %v657
        %v801 = vmul.f32 %v288, %v657
        %v802 = vmul.f32 %v289, %v657
        %v803 = vmul.f32 %v290, %v657
        %v804 = vmul.f32 %v291, %v657
        %v805 = vmul.f32 %v292, %v657
        %v806 = vmul.f32 %v293, %v657
        %v807 = vmul.f32 %v294, %v657
        %v808 = vmul.f32 %v295, %v657
        %v809 = vmul.f32 %v296, %v657
        %v810 = vmul.f32 %v297, %v657
        %v811 = vmul.f32 %v298, %v657
        %v812 = vmul.f32 %v299, %v657
        %v813 = vmul.f32 %v300, %v657
        %v814 = vmul.f32 %v301, %v657
        %v815 = vmul.f32 %v302, %v657
        %v816 = vmul.f32 %v303, %v657
        %v817 = vmul.f32 %v304, %v657
        %v818 = vmul.f32 %v305, %v657
        %v819 = vmul.f32 %v306, %v657
        %v820 = vmul.f32 %v307, %v657
        %v821 = vmul.f32 %v308, %v657
        %v822 = vmul.f32 %v309, %v657
        %v823 = vmul.f32 %v310, %v657
        %v824 = vmul.f32 %v311, %v657
        %v825 = vmul.f32 %v312, %v657
        %v826 = vmul.f32 %v313, %v657
        %v827 = vmul.f32 %v314, %v657
        %v828 = vmul.f32 %v315, %v657
        %v829 = vmul.f32 %v316, %v657
        %v830 = vmul.f32 %v317, %v657
        %v831 = vmul.f32 %v318, %v657
        %v832 = vmul.f32 %v319, %v657
        %v833 = vmul.f32 %v320, %v657
        %v834 = vmul.f32 %v321, %v657
        %v835 = vmul.f32 %v322, %v657
        %v836 = vmul.f32 %v323, %v657
        %v837 = vmul.f32 %v324, %v657
        %v838 = vmul.f32 %v325, %v657
        %v839 = vmul.f32 %v326, %v657
        %v840 = vmul.f32 %v327, %v657
        %v841 = vmul.f32 %v328, %v657
        %v842 = vmul.f32 %v329, %v657
        %v843 = vmul.f32 %v330, %v657
        %v844 = vmul.f32 %v331, %v657
        %v845 = vmul.f32 %v332, %v657
        %v846 = vmul.f32 %v333, %v657
        %v847 = vmul.f32 %v334, %v657
        %v848 = vmul.f32 %v335, %v657
        %v849 = vmul.f32 %v336, %v657
        %v850 = vmul.f32 %v337, %v657
        %v851 = vmul.f32 %v338, %v657
        %v852 = vmul.f32 %v339, %v657
        %v853 = vmul.f32 %v340, %v657
        %v854 = vmul.f32 %v341, %v657
        %v855 = vmul.f32 %v342, %v657
        %v856 = vmul.f32 %v343, %v657
        %v857 = vmul.f32 %v344, %v657
        %v858 = vmul.f32 %v345, %v657
        %v859 = vmul.f32 %v346, %v657
        %v860 = vmul.f32 %v347, %v657
        %v861 = vmul.f32 %v348, %v657
        %v862 = vmul.f32 %v349, %v657
        %v863 = vmul.f32 %v350, %v657
        %v864 = vmul.f32 %v351, %v657
        %v865 = vmul.f32 %v352, %v657
        %v866 = vmul.f32 %v353, %v657
        %v867 = vmul.f32 %v354, %v657
        %v868 = vmul.f32 %v355, %v657
        %v869 = vmul.f32 %v356, %v657
        %v870 = vmul.f32 %v357, %v657
        %v871 = vmul.f32 %v358, %v657
        %v872 = vmul.f32 %v359, %v657
        %v873 = vmul.f32 %v360, %v657
        %v874 = vmul.f32 %v361, %v657
        %v875 = vmul.f32 %v362, %v657
        %v876 = vmul.f32 %v363, %v657
        %v877 = vmul.f32 %v364, %v657
        %v878 = vmul.f32 %v365, %v657
        %v879 = vmul.f32 %v366, %v657
        %v880 = vmul.f32 %v367, %v657
        %v881 = vmul.f32 %v368, %v657
        %v882 = vmul.f32 %v369, %v657
        %v883 = vmul.f32 %v370, %v657
        %v884 = vmul.f32 %v371, %v657
        %v885 = vmul.f32 %v372, %v657
        %v886 = vmul.f32 %v373, %v657
        %v887 = vmul.f32 %v374, %v657
        %v888 = vmul.f32 %v375, %v657
        %v889 = vmul.f32 %v376, %v657
        %v890 = vmul.f32 %v377, %v657
        %v891 = vmul.f32 %v378, %v657
        %v892 = vmul.f32 %v379, %v657
        %v893 = vmul.f32 %v380, %v657
        %v894 = vmul.f32 %v381, %v657
        %v895 = vmul.f32 %v382, %v657
        %v896 = vmul.f32 %v383, %v657
        %v897 = vmul.f32 %v384, %v657
        %v898 = vmul.f32 %v385, %v657
        %v899 = vmul.f32 %v386, %v657
        %v900 = vmul.f32 %v387, %v657
        %v901 = vmul.f32 %v388, %v657
        %v902 = vmul.f32 %v389, %v657
        %v903 = vmul.f32 %v390, %v657
        %v904 = vmul.f32 %v391, %v657
        %v905 = vmul.f32 %v392, %v657
        %v906 = vmul.f32 %v393, %v657
        %v907 = vmul.f32 %v394, %v657
        %v908 = vmul.f32 %v395, %v657
        %v909 = vmul.f32 %v396, %v657
        %v910 = vmul.f32 %v397, %v657
        %v911 = vmul.f32 %v398, %v657
        %v912 = vmul.f32 %v399, %v657
        %v913 = vmul.f32 %v400, %v657
        %v914 = vmul.f32 %v401, %v657
        %v915 = vmul.f32 %v402, %v657
        %v916 = vmul.f32 %v403, %v657
        %v917 = vmul.f32 %v404, %v657
        %v918 = vmul.f32 %v405, %v657
        %v919 = vmul.f32 %v406, %v657
        %v920 = vmul.f32 %v407, %v657
        %v921 = vmul.f32 %v408, %v657
        %v922 = vmul.f32 %v409, %v657
        %v923 = vmul.f32 %v410, %v657
        %v924 = vmul.f32 %v411, %v657
        %v925 = vmul.f32 %v412, %v657
        %v926 = vmul.f32 %v413, %v657
        %v927 = vmul.f32 %v414, %v657
        %v928 = vmul.f32 %v415, %v657
        %v929 = vmul.f32 %v416, %v657
        %v930 = vmul.f32 %v417, %v657
        %v931 = vmul.f32 %v418, %v657
        %v932 = vmul.f32 %v419, %v657
        %v933 = vmul.f32 %v420, %v657
        %v934 = vmul.f32 %v421, %v657
        %v935 = vmul.f32 %v422, %v657
        %v936 = vmul.f32 %v423, %v657
        %v937 = vmul.f32 %v424, %v657
        %v938 = vmul.f32 %v425, %v657
        %v939 = vmul.f32 %v426, %v657
        %v940 = vmul.f32 %v427, %v657
        %v941 = vmul.f32 %v428, %v657
        %v942 = vmul.f32 %v429, %v657
        %v943 = vmul.f32 %v430, %v657
        %v944 = vmul.f32 %v431, %v657
        %v945 = vmul.f32 %v432, %v657
        %v946 = vmul.f32 %v433, %v657
        %v947 = vmul.f32 %v434, %v657
        %v948 = vmul.f32 %v435, %v657
        %v949 = vmul.f32 %v436, %v657
        %v950 = vmul.f32 %v437, %v657
        %v951 = vmul.f32 %v438, %v657
        %v952 = vmul.f32 %v439, %v657
        %v953 = vmul.f32 %v440, %v657
        %v954 = vmul.f32 %v441, %v657
        %v955 = vmul.f32 %v442, %v657
        %v956 = vmul.f32 %v443, %v657
        %v957 = vmul.f32 %v444, %v657
        %v958 = vmul.f32 %v445, %v657
        %v959 = vmul.f32 %v446, %v657
        %v960 = vmul.f32 %v447, %v657
        %v961 = vmul.f32 %v448, %v657
        %v962 = vmul.f32 %v449, %v657
        %v963 = vmul.f32 %v450, %v657
        %v964 = vmul.f32 %v451, %v657
        %v965 = vmul.f32 %v452, %v657
        %v966 = vmul.f32 %v453, %v657
        %v967 = vmul.f32 %v454, %v657
        %v968 = vmul.f32 %v455, %v657
        %v969 = vmul.f32 %v456, %v657
        %v970 = vmul.f32 %v457, %v657
        %v971 = vmul.f32 %v458, %v657
        %v972 = vmul.f32 %v459, %v657
        %v973 = vmul.f32 %v460, %v657
        %v974 = vmul.f32 %v461, %v657
        %v975 = vmul.f32 %v462, %v657
        %v976 = vmul.f32 %v463, %v657
        %v977 = vmul.f32 %v464, %v657
        %v978 = vmul.f32 %v465, %v657
        %v979 = vmul.f32 %v466, %v657
        %v980 = vmul.f32 %v467, %v657
        %v981 = vmul.f32 %v468, %v657
        %v982 = vmul.f32 %v469, %v657
        %v983 = vmul.f32 %v470, %v657
        %v984 = vmul.f32 %v471, %v657
        %v985 = vmul.f32 %v472, %v657
        %v986 = vmul.f32 %v473, %v657
        %v987 = vmul.f32 %v474, %v657
        %v988 = vmul.f32 %v475, %v657
        %v989 = vmul.f32 %v476, %v657
        %v990 = vmul.f32 %v477, %v657
        %v991 = vmul.f32 %v478, %v657
        %v992 = vmul.f32 %v479, %v657
        %v993 = vmul.f32 %v480, %v657
        %v994 = vmul.f32 %v481, %v657
        %v995 = vmul.f32 %v482, %v657
        %v996 = vmul.f32 %v483, %v657
        %v997 = vmul.f32 %v484, %v657
        %v998 = vmul.f32 %v485, %v657
        %v999 = vmul.f32 %v486, %v657
        %v1000 = vmul.f32 %v487, %v657
        %v1001 = vmul.f32 %v488, %v657
        %v1002 = vmul.f32 %v489, %v657
        %v1003 = vmul.f32 %v490, %v657
        %v1004 = vmul.f32 %v491, %v657
        %v1005 = vmul.f32 %v492, %v657
        %v1006 = vmul.f32 %v493, %v657
        %v1007 = vmul.f32 %v494, %v657
        %v1008 = vmul.f32 %v495, %v657
        %v1009 = vmul.f32 %v496, %v657
        %v1010 = vmul.f32 %v497, %v657
        %v1011 = vmul.f32 %v498, %v657
        %v1012 = vmul.f32 %v499, %v657
        %v1013 = vmul.f32 %v500, %v657
        %v1014 = vmul.f32 %v501, %v657
        %v1015 = vmul.f32 %v502, %v657
        %v1016 = vmul.f32 %v503, %v657
        %v1017 = vmul.f32 %v504, %v657
        %v1018 = vmul.f32 %v505, %v657
        %v1019 = vmul.f32 %v506, %v657
        %v1020 = vmul.f32 %v507, %v657
        %v1021 = vmul.f32 %v508, %v657
        %v1022 = vmul.f32 %v509, %v657
        %v1023 = vmul.f32 %v510, %v657
        %v1024 = vmul.f32 %v511, %v657
        %v1025 = vmul.f32 %v512, %v657
        %v1026 = vmul.f32 %v513, %v657
        %v1027 = vmul.f32 %v514, %v657
        %v1028 = vmul.f32 %v515, %v657
        %v1029 = vmul.f32 %v516, %v657
        %v1030 = vmul.f32 %v517, %v657
        %v1031 = vmul.f32 %v518, %v657
        %v1032 = vmul.f32 %v519, %v657
        %v1033 = vmul.f32 %v520, %v657
        %v1034 = vmul.f32 %v521, %v657
        %v1035 = vmul.f32 %v522, %v657
        %v1036 = vmul.f32 %v523, %v657
        %v1037 = vmul.f32 %v524, %v657
        %v1038 = vmul.f32 %v525, %v657
        %v1039 = vmul.f32 %v526, %v657
        %v1040 = vmul.f32 %v527, %v657
        %v1041 = vmul.f32 %v528, %v657
        %v1042 = vmul.f32 %v529, %v657
        %v1043 = vmul.f32 %v530, %v657
        %v1044 = vmul.f32 %v531, %v657
        %v1045 = vmul.f32 %v532, %v657
        %v1046 = vmul.f32 %v533, %v657
        %v1047 = vmul.f32 %v534, %v657
        %v1048 = vmul.f32 %v535, %v657
        %v1049 = vmul.f32 %v536, %v657
        %v1050 = vmul.f32 %v537, %v657
        %v1051 = vmul.f32 %v538, %v657
        %v1052 = vmul.f32 %v539, %v657
        %v1053 = vmul.f32 %v540, %v657
        %v1054 = vmul.f32 %v541, %v657
        %v1055 = vmul.f32 %v542, %v657
        %v1056 = vmul.f32 %v543, %v657
        %v1057 = vmul.f32 %v544, %v657
        %v1058 = vmul.f32 %v545, %v657
        %v1059 = vmul.f32 %v546, %v657
        %v1060 = vmul.f32 %v547, %v657
        %v1061 = vmul.f32 %v548, %v657
        %v1062 = vmul.f32 %v549, %v657
        %v1063 = vmul.f32 %v550, %v657
        %v1064 = vmul.f32 %v551, %v657
        %v1065 = vmul.f32 %v552, %v657
        %v1066 = vmul.f32 %v553, %v657
        %v1067 = vmul.f32 %v554, %v657
        %v1068 = vmul.f32 %v555, %v657
        %v1069 = vmul.f32 %v556, %v657
        %v1070 = vmul.f32 %v557, %v657
        %v1071 = vmul.f32 %v558, %v657
        %v1072 = vmul.f32 %v559, %v657
        %v1073 = vmul.f32 %v560, %v657
        %v1074 = vmul.f32 %v561, %v657
        %v1075 = vmul.f32 %v562, %v657
        %v1076 = vmul.f32 %v563, %v657
        %v1077 = vmul.f32 %v564, %v657
        %v1078 = vmul.f32 %v565, %v657
        %v1079 = vmul.f32 %v566, %v657
        %v1080 = vmul.f32 %v567, %v657
        %v1081 = vmul.f32 %v568, %v657
        %v1082 = vmul.f32 %v569, %v657
        %v1083 = vmul.f32 %v570, %v657
        %v1084 = vmul.f32 %v571, %v657
        %v1085 = vmul.f32 %v572, %v657
        %v1086 = vmul.f32 %v573, %v657
        %v1087 = vmul.f32 %v574, %v657
        %v1088 = vmul.f32 %v575, %v657
        %v1089 = vmul.f32 %v576, %v657
        %v1090 = vmul.f32 %v577, %v657
        %v1091 = vmul.f32 %v578, %v657
        %v1092 = vmul.f32 %v579, %v657
        %v1093 = vmul.f32 %v580, %v657
        %v1094 = vmul.f32 %v581, %v657
        %v1095 = vmul.f32 %v582, %v657
        %v1096 = vmul.f32 %v583, %v657
        %v1097 = vmul.f32 %v584, %v657
        %v1098 = vmul.f32 %v585, %v657
        %v1099 = vmul.f32 %v586, %v657
        %v1100 = vmul.f32 %v587, %v657
        %v1101 = vmul.f32 %v588, %v657
        %v1102 = vmul.f32 %v589, %v657
        %v1103 = vmul.f32 %v590, %v657
        %v1104 = vmul.f32 %v591, %v657
        %v1105 = vmul.f32 %v592, %v657
        %v1106 = vmul.f32 %v593, %v657
        %v1107 = vmul.f32 %v594, %v657
        %v1108 = vmul.f32 %v595, %v657
        %v1109 = vmul.f32 %v596, %v657
        %v1110 = vmul.f32 %v597, %v657
        %v1111 = vmul.f32 %v598, %v657
        %v1112 = vmul.f32 %v599, %v657
        %v1113 = vmul.f32 %v600, %v657
        %v1114 = vmul.f32 %v601, %v657
        %v1115 = vmul.f32 %v602, %v657
        %v1116 = vmul.f32 %v603, %v657
        %v1117 = vmul.f32 %v604, %v657
        %v1118 = vmul.f32 %v605, %v657
        %v1119 = vmul.f32 %v606, %v657
        %v1120 = vmul.f32 %v607, %v657
        %v1121 = vmul.f32 %v608, %v657
        %v1122 = vmul.f32 %v609, %v657
        %v1123 = vmul.f32 %v610, %v657
        %v1124 = vmul.f32 %v611, %v657
        %v1125 = vmul.f32 %v612, %v657
        %v1126 = vmul.f32 %v613, %v657
        %v1127 = vmul.f32 %v614, %v657
        %v1128 = vmul.f32 %v615, %v657
        %v1129 = vmul.f32 %v616, %v657
        %v1130 = vmul.f32 %v617, %v657
        %v1131 = vmul.f32 %v618, %v657
        %v1132 = vmul.f32 %v619, %v657
        %v1133 = vmul.f32 %v620, %v657
        %v1134 = vmul.f32 %v621, %v657
        %v1135 = vmul.f32 %v622, %v657
        %v1136 = vmul.f32 %v623, %v657
        %v1137 = vmul.f32 %v624, %v657
        %v1138 = vmul.f32 %v625, %v657
        %v1139 = vmul.f32 %v626, %v657
        %v1140 = vmul.f32 %v627, %v657
        %v1141 = vmul.f32 %v628, %v657
        %v1142 = vmul.f32 %v629, %v657
        %v1143 = vmul.f32 %v630, %v657
        %v1144 = vmul.f32 %v631, %v657
        %v1145 = vmul.f32 %v632, %v657
        %v1146 = vmul.f32 %v633, %v657
        %v1147 = vmul.f32 %v634, %v657
        %v1148 = vmul.f32 %v635, %v657
        %v1149 = vmul.f32 %v636, %v657
        %v1150 = vmul.f32 %v637, %v657
        %v1151 = vmul.f32 %v638, %v657
        %v1152 = vmul.f32 %v639, %v657
        %v1153 = vmul.f32 %v640, %v657
        %v1154 = vmul.f32 %v641, %v657
        %v1155 = vmul.f32 %v642, %v657
        %v1156 = vmul.f32 %v643, %v657
        %v1157 = vmul.f32 %v644, %v657
        %v1158 = vmul.f32 %v645, %v657
        %v1159 = vmul.f32 %v646, %v657
        %v1160 = vmul.f32 %v647, %v657
        %v1161 = vmul.f32 %v648, %v657
        %v1162 = vmul.f32 %v649, %v657
        %v1163 = vmul.f32 %v650, %v657
        %v1164 = vmul.f32 %v651, %v657
        %v1165 = vmul.f32 %v652, %v657
        %v1166 = vmul.f32 %v653, %v657
        %v1167 = vmul.f32 %v654, %v657
        %v1168 = vmul.f32 %v655, %v657
        %v1169 = vmul.f32 %v656, %v657
        %v1170 = vstv %s144
        %v1171 = vadd.f32 %v658, %v1170
        %v1172 = vadd.f32 %v659, %v1170
        %v1173 = vadd.f32 %v660, %v1170
        %v1174 = vadd.f32 %v661, %v1170
        %v1175 = vadd.f32 %v662, %v1170
        %v1176 = vadd.f32 %v663, %v1170
        %v1177 = vadd.f32 %v664, %v1170
        %v1178 = vadd.f32 %v665, %v1170
        %v1179 = vadd.f32 %v666, %v1170
        %v1180 = vadd.f32 %v667, %v1170
        %v1181 = vadd.f32 %v668, %v1170
        %v1182 = vadd.f32 %v669, %v1170
        %v1183 = vadd.f32 %v670, %v1170
        %v1184 = vadd.f32 %v671, %v1170
        %v1185 = vadd.f32 %v672, %v1170
        %v1186 = vadd.f32 %v673, %v1170
        %v1187 = vadd.f32 %v674, %v1170
        %v1188 = vadd.f32 %v675, %v1170
        %v1189 = vadd.f32 %v676, %v1170
        %v1190 = vadd.f32 %v677, %v1170
        %v1191 = vadd.f32 %v678, %v1170
        %v1192 = vadd.f32 %v679, %v1170
        %v1193 = vadd.f32 %v680, %v1170
        %v1194 = vadd.f32 %v681, %v1170
        %v1195 = vadd.f32 %v682, %v1170
        %v1196 = vadd.f32 %v683, %v1170
        %v1197 = vadd.f32 %v684, %v1170
        %v1198 = vadd.f32 %v685, %v1170
        %v1199 = vadd.f32 %v686, %v1170
        %v1200 = vadd.f32 %v687, %v1170
        %v1201 = vadd.f32 %v688, %v1170
        %v1202 = vadd.f32 %v689, %v1170
        %v1203 = vadd.f32 %v690, %v1170
        %v1204 = vadd.f32 %v691, %v1170
        %v1205 = vadd.f32 %v692, %v1170
        %v1206 = vadd.f32 %v693, %v1170
        %v1207 = vadd.f32 %v694, %v1170
        %v1208 = vadd.f32 %v695, %v1170
        %v1209 = vadd.f32 %v696, %v1170
        %v1210 = vadd.f32 %v697, %v1170
        %v1211 = vadd.f32 %v698, %v1170
        %v1212 = vadd.f32 %v699, %v1170
        %v1213 = vadd.f32 %v700, %v1170
        %v1214 = vadd.f32 %v701, %v1170
        %v1215 = vadd.f32 %v702, %v1170
        %v1216 = vadd.f32 %v703, %v1170
        %v1217 = vadd.f32 %v704, %v1170
        %v1218 = vadd.f32 %v705, %v1170
        %v1219 = vadd.f32 %v706, %v1170
        %v1220 = vadd.f32 %v707, %v1170
        %v1221 = vadd.f32 %v708, %v1170
        %v1222 = vadd.f32 %v709, %v1170
        %v1223 = vadd.f32 %v710, %v1170
        %v1224 = vadd.f32 %v711, %v1170
        %v1225 = vadd.f32 %v712, %v1170
        %v1226 = vadd.f32 %v713, %v1170
        %v1227 = vadd.f32 %v714, %v1170
        %v1228 = vadd.f32 %v715, %v1170
        %v1229 = vadd.f32 %v716, %v1170
        %v1230 = vadd.f32 %v717, %v1170
        %v1231 = vadd.f32 %v718, %v1170
        %v1232 = vadd.f32 %v719, %v1170
        %v1233 = vadd.f32 %v720, %v1170
        %v1234 = vadd.f32 %v721, %v1170
        %v1235 = vadd.f32 %v722, %v1170
        %v1236 = vadd.f32 %v723, %v1170
        %v1237 = vadd.f32 %v724, %v1170
        %v1238 = vadd.f32 %v725, %v1170
        %v1239 = vadd.f32 %v726, %v1170
        %v1240 = vadd.f32 %v727, %v1170
        %v1241 = vadd.f32 %v728, %v1170
        %v1242 = vadd.f32 %v729, %v1170
        %v1243 = vadd.f32 %v730, %v1170
        %v1244 = vadd.f32 %v731, %v1170
        %v1245 = vadd.f32 %v732, %v1170
        %v1246 = vadd.f32 %v733, %v1170
        %v1247 = vadd.f32 %v734, %v1170
        %v1248 = vadd.f32 %v735, %v1170
        %v1249 = vadd.f32 %v736, %v1170
        %v1250 = vadd.f32 %v737, %v1170
        %v1251 = vadd.f32 %v738, %v1170
        %v1252 = vadd.f32 %v739, %v1170
        %v1253 = vadd.f32 %v740, %v1170
        %v1254 = vadd.f32 %v741, %v1170
        %v1255 = vadd.f32 %v742, %v1170
        %v1256 = vadd.f32 %v743, %v1170
        %v1257 = vadd.f32 %v744, %v1170
        %v1258 = vadd.f32 %v745, %v1170
        %v1259 = vadd.f32 %v746, %v1170
        %v1260 = vadd.f32 %v747, %v1170
        %v1261 = vadd.f32 %v748, %v1170
        %v1262 = vadd.f32 %v749, %v1170
        %v1263 = vadd.f32 %v750, %v1170
        %v1264 = vadd.f32 %v751, %v1170
        %v1265 = vadd.f32 %v752, %v1170
        %v1266 = vadd.f32 %v753, %v1170
        %v1267 = vadd.f32 %v754, %v1170
        %v1268 = vadd.f32 %v755, %v1170
        %v1269 = vadd.f32 %v756, %v1170
        %v1270 = vadd.f32 %v757, %v1170
        %v1271 = vadd.f32 %v758, %v1170
        %v1272 = vadd.f32 %v759, %v1170
        %v1273 = vadd.f32 %v760, %v1170
        %v1274 = vadd.f32 %v761, %v1170
        %v1275 = vadd.f32 %v762, %v1170
        %v1276 = vadd.f32 %v763, %v1170
        %v1277 = vadd.f32 %v764, %v1170
        %v1278 = vadd.f32 %v765, %v1170
        %v1279 = vadd.f32 %v766, %v1170
        %v1280 = vadd.f32 %v767, %v1170
        %v1281 = vadd.f32 %v768, %v1170
        %v1282 = vadd.f32 %v769, %v1170
        %v1283 = vadd.f32 %v770, %v1170
        %v1284 = vadd.f32 %v771, %v1170
        %v1285 = vadd.f32 %v772, %v1170
        %v1286 = vadd.f32 %v773, %v1170
        %v1287 = vadd.f32 %v774, %v1170
        %v1288 = vadd.f32 %v775, %v1170
        %v1289 = vadd.f32 %v776, %v1170
        %v1290 = vadd.f32 %v777, %v1170
        %v1291 = vadd.f32 %v778, %v1170
        %v1292 = vadd.f32 %v779, %v1170
        %v1293 = vadd.f32 %v780, %v1170
        %v1294 = vadd.f32 %v781, %v1170
        %v1295 = vadd.f32 %v782, %v1170
        %v1296 = vadd.f32 %v783, %v1170
        %v1297 = vadd.f32 %v784, %v1170
        %v1298 = vadd.f32 %v785, %v1170
        %v1299 = vadd.f32 %v786, %v1170
        %v1300 = vadd.f32 %v787, %v1170
        %v1301 = vadd.f32 %v788, %v1170
        %v1302 = vadd.f32 %v789, %v1170
        %v1303 = vadd.f32 %v790, %v1170
        %v1304 = vadd.f32 %v791, %v1170
        %v1305 = vadd.f32 %v792, %v1170
        %v1306 = vadd.f32 %v793, %v1170
        %v1307 = vadd.f32 %v794, %v1170
        %v1308 = vadd.f32 %v795, %v1170
        %v1309 = vadd.f32 %v796, %v1170
        %v1310 = vadd.f32 %v797, %v1170
        %v1311 = vadd.f32 %v798, %v1170
        %v1312 = vadd.f32 %v799, %v1170
        %v1313 = vadd.f32 %v800, %v1170
        %v1314 = vadd.f32 %v801, %v1170
        %v1315 = vadd.f32 %v802, %v1170
        %v1316 = vadd.f32 %v803, %v1170
        %v1317 = vadd.f32 %v804, %v1170
        %v1318 = vadd.f32 %v805, %v1170
        %v1319 = vadd.f32 %v806, %v1170
        %v1320 = vadd.f32 %v807, %v1170
        %v1321 = vadd.f32 %v808, %v1170
        %v1322 = vadd.f32 %v809, %v1170
        %v1323 = vadd.f32 %v810, %v1170
        %v1324 = vadd.f32 %v811, %v1170
        %v1325 = vadd.f32 %v812, %v1170
        %v1326 = vadd.f32 %v813, %v1170
        %v1327 = vadd.f32 %v814, %v1170
        %v1328 = vadd.f32 %v815, %v1170
        %v1329 = vadd.f32 %v816, %v1170
        %v1330 = vadd.f32 %v817, %v1170
        %v1331 = vadd.f32 %v818, %v1170
        %v1332 = vadd.f32 %v819, %v1170
        %v1333 = vadd.f32 %v820, %v1170
        %v1334 = vadd.f32 %v821, %v1170
        %v1335 = vadd.f32 %v822, %v1170
        %v1336 = vadd.f32 %v823, %v1170
        %v1337 = vadd.f32 %v824, %v1170
        %v1338 = vadd.f32 %v825, %v1170
        %v1339 = vadd.f32 %v826, %v1170
        %v1340 = vadd.f32 %v827, %v1170
        %v1341 = vadd.f32 %v828, %v1170
        %v1342 = vadd.f32 %v829, %v1170
        %v1343 = vadd.f32 %v830, %v1170
        %v1344 = vadd.f32 %v831, %v1170
        %v1345 = vadd.f32 %v832, %v1170
        %v1346 = vadd.f32 %v833, %v1170
        %v1347 = vadd.f32 %v834, %v1170
        %v1348 = vadd.f32 %v835, %v1170
        %v1349 = vadd.f32 %v836, %v1170
        %v1350 = vadd.f32 %v837, %v1170
        %v1351 = vadd.f32 %v838, %v1170
        %v1352 = vadd.f32 %v839, %v1170
        %v1353 = vadd.f32 %v840, %v1170
        %v1354 = vadd.f32 %v841, %v1170
        %v1355 = vadd.f32 %v842, %v1170
        %v1356 = vadd.f32 %v843, %v1170
        %v1357 = vadd.f32 %v844, %v1170
        %v1358 = vadd.f32 %v845, %v1170
        %v1359 = vadd.f32 %v846, %v1170
        %v1360 = vadd.f32 %v847, %v1170
        %v1361 = vadd.f32 %v848, %v1170
        %v1362 = vadd.f32 %v849, %v1170
        %v1363 = vadd.f32 %v850, %v1170
        %v1364 = vadd.f32 %v851, %v1170
        %v1365 = vadd.f32 %v852, %v1170
        %v1366 = vadd.f32 %v853, %v1170
        %v1367 = vadd.f32 %v854, %v1170
        %v1368 = vadd.f32 %v855, %v1170
        %v1369 = vadd.f32 %v856, %v1170
        %v1370 = vadd.f32 %v857, %v1170
        %v1371 = vadd.f32 %v858, %v1170
        %v1372 = vadd.f32 %v859, %v1170
        %v1373 = vadd.f32 %v860, %v1170
        %v1374 = vadd.f32 %v861, %v1170
        %v1375 = vadd.f32 %v862, %v1170
        %v1376 = vadd.f32 %v863, %v1170
        %v1377 = vadd.f32 %v864, %v1170
        %v1378 = vadd.f32 %v865, %v1170
        %v1379 = vadd.f32 %v866, %v1170
        %v1380 = vadd.f32 %v867, %v1170
        %v1381 = vadd.f32 %v868, %v1170
        %v1382 = vadd.f32 %v869, %v1170
        %v1383 = vadd.f32 %v870, %v1170
        %v1384 = vadd.f32 %v871, %v1170
        %v1385 = vadd.f32 %v872, %v1170
        %v1386 = vadd.f32 %v873, %v1170
        %v1387 = vadd.f32 %v874, %v1170
        %v1388 = vadd.f32 %v875, %v1170
        %v1389 = vadd.f32 %v876, %v1170
        %v1390 = vadd.f32 %v877, %v1170
        %v1391 = vadd.f32 %v878, %v1170
        %v1392 = vadd.f32 %v879, %v1170
        %v1393 = vadd.f32 %v880, %v1170
        %v1394 = vadd.f32 %v881, %v1170
        %v1395 = vadd.f32 %v882, %v1170
        %v1396 = vadd.f32 %v883, %v1170
        %v1397 = vadd.f32 %v884, %v1170
        %v1398 = vadd.f32 %v885, %v1170
        %v1399 = vadd.f32 %v886, %v1170
        %v1400 = vadd.f32 %v887, %v1170
        %v1401 = vadd.f32 %v888, %v1170
        %v1402 = vadd.f32 %v889, %v1170
        %v1403 = vadd.f32 %v890, %v1170
        %v1404 = vadd.f32 %v891, %v1170
        %v1405 = vadd.f32 %v892, %v1170
        %v1406 = vadd.f32 %v893, %v1170
        %v1407 = vadd.f32 %v894, %v1170
        %v1408 = vadd.f32 %v895, %v1170
        %v1409 = vadd.f32 %v896, %v1170
        %v1410 = vadd.f32 %v897, %v1170
        %v1411 = vadd.f32 %v898, %v1170
        %v1412 = vadd.f32 %v899, %v1170
        %v1413 = vadd.f32 %v900, %v1170
        %v1414 = vadd.f32 %v901, %v1170
        %v1415 = vadd.f32 %v902, %v1170
        %v1416 = vadd.f32 %v903, %v1170
        %v1417 = vadd.f32 %v904, %v1170
        %v1418 = vadd.f32 %v905, %v1170
        %v1419 = vadd.f32 %v906, %v1170
        %v1420 = vadd.f32 %v907, %v1170
        %v1421 = vadd.f32 %v908, %v1170
        %v1422 = vadd.f32 %v909, %v1170
        %v1423 = vadd.f32 %v910, %v1170
        %v1424 = vadd.f32 %v911, %v1170
        %v1425 = vadd.f32 %v912, %v1170
        %v1426 = vadd.f32 %v913, %v1170
        %v1427 = vadd.f32 %v914, %v1170
        %v1428 = vadd.f32 %v915, %v1170
        %v1429 = vadd.f32 %v916, %v1170
        %v1430 = vadd.f32 %v917, %v1170
        %v1431 = vadd.f32 %v918, %v1170
        %v1432 = vadd.f32 %v919, %v1170
        %v1433 = vadd.f32 %v920, %v1170
        %v1434 = vadd.f32 %v921, %v1170
        %v1435 = vadd.f32 %v922, %v1170
        %v1436 = vadd.f32 %v923, %v1170
        %v1437 = vadd.f32 %v924, %v1170
        %v1438 = vadd.f32 %v925, %v1170
        %v1439 = vadd.f32 %v926, %v1170
        %v1440 = vadd.f32 %v927, %v1170
        %v1441 = vadd.f32 %v928, %v1170
        %v1442 = vadd.f32 %v929, %v1170
        %v1443 = vadd.f32 %v930, %v1170
        %v1444 = vadd.f32 %v931, %v1170
        %v1445 = vadd.f32 %v932, %v1170
        %v1446 = vadd.f32 %v933, %v1170
        %v1447 = vadd.f32 %v934, %v1170
        %v1448 = vadd.f32 %v935, %v1170
        %v1449 = vadd.f32 %v936, %v1170
        %v1450 = vadd.f32 %v937, %v1170
        %v1451 = vadd.f32 %v938, %v1170
        %v1452 = vadd.f32 %v939, %v1170
        %v1453 = vadd.f32 %v940, %v1170
        %v1454 = vadd.f32 %v941, %v1170
        %v1455 = vadd.f32 %v942, %v1170
        %v1456 = vadd.f32 %v943, %v1170
        %v1457 = vadd.f32 %v944, %v1170
        %v1458 = vadd.f32 %v945, %v1170
        %v1459 = vadd.f32 %v946, %v1170
        %v1460 = vadd.f32 %v947, %v1170
        %v1461 = vadd.f32 %v948, %v1170
        %v1462 = vadd.f32 %v949, %v1170
        %v1463 = vadd.f32 %v950, %v1170
        %v1464 = vadd.f32 %v951, %v1170
        %v1465 = vadd.f32 %v952, %v1170
        %v1466 = vadd.f32 %v953, %v1170
        %v1467 = vadd.f32 %v954, %v1170
        %v1468 = vadd.f32 %v955, %v1170
        %v1469 = vadd.f32 %v956, %v1170
        %v1470 = vadd.f32 %v957, %v1170
        %v1471 = vadd.f32 %v958, %v1170
        %v1472 = vadd.f32 %v959, %v1170
        %v1473 = vadd.f32 %v960, %v1170
        %v1474 = vadd.f32 %v961, %v1170
        %v1475 = vadd.f32 %v962, %v1170
        %v1476 = vadd.f32 %v963, %v1170
        %v1477 = vadd.f32 %v964, %v1170
        %v1478 = vadd.f32 %v965, %v1170
        %v1479 = vadd.f32 %v966, %v1170
        %v1480 = vadd.f32 %v967, %v1170
        %v1481 = vadd.f32 %v968, %v1170
        %v1482 = vadd.f32 %v969, %v1170
        %v1483 = vadd.f32 %v970, %v1170
        %v1484 = vadd.f32 %v971, %v1170
        %v1485 = vadd.f32 %v972, %v1170
        %v1486 = vadd.f32 %v973, %v1170
        %v1487 = vadd.f32 %v974, %v1170
        %v1488 = vadd.f32 %v975, %v1170
        %v1489 = vadd.f32 %v976, %v1170
        %v1490 = vadd.f32 %v977, %v1170
        %v1491 = vadd.f32 %v978, %v1170
        %v1492 = vadd.f32 %v979, %v1170
        %v1493 = vadd.f32 %v980, %v1170
        %v1494 = vadd.f32 %v981, %v1170
        %v1495 = vadd.f32 %v982, %v1170
        %v1496 = vadd.f32 %v983, %v1170
        %v1497 = vadd.f32 %v984, %v1170
        %v1498 = vadd.f32 %v985, %v1170
        %v1499 = vadd.f32 %v986, %v1170
        %v1500 = vadd.f32 %v987, %v1170
        %v1501 = vadd.f32 %v988, %v1170
        %v1502 = vadd.f32 %v989, %v1170
        %v1503 = vadd.f32 %v990, %v1170
        %v1504 = vadd.f32 %v991, %v1170
        %v1505 = vadd.f32 %v992, %v1170
        %v1506 = vadd.f32 %v993, %v1170
        %v1507 = vadd.f32 %v994, %v1170
        %v1508 = vadd.f32 %v995, %v1170
        %v1509 = vadd.f32 %v996, %v1170
        %v1510 = vadd.f32 %v997, %v1170
        %v1511 = vadd.f32 %v998, %v1170
        %v1512 = vadd.f32 %v999, %v1170
        %v1513 = vadd.f32 %v1000, %v1170
        %v1514 = vadd.f32 %v1001, %v1170
        %v1515 = vadd.f32 %v1002, %v1170
        %v1516 = vadd.f32 %v1003, %v1170
        %v1517 = vadd.f32 %v1004, %v1170
        %v1518 = vadd.f32 %v1005, %v1170
        %v1519 = vadd.f32 %v1006, %v1170
        %v1520 = vadd.f32 %v1007, %v1170
        %v1521 = vadd.f32 %v1008, %v1170
        %v1522 = vadd.f32 %v1009, %v1170
        %v1523 = vadd.f32 %v1010, %v1170
        %v1524 = vadd.f32 %v1011, %v1170
        %v1525 = vadd.f32 %v1012, %v1170
        %v1526 = vadd.f32 %v1013, %v1170
        %v1527 = vadd.f32 %v1014, %v1170
        %v1528 = vadd.f32 %v1015, %v1170
        %v1529 = vadd.f32 %v1016, %v1170
        %v1530 = vadd.f32 %v1017, %v1170
        %v1531 = vadd.f32 %v1018, %v1170
        %v1532 = vadd.f32 %v1019, %v1170
        %v1533 = vadd.f32 %v1020, %v1170
        %v1534 = vadd.f32 %v1021, %v1170
        %v1535 = vadd.f32 %v1022, %v1170
        %v1536 = vadd.f32 %v1023, %v1170
        %v1537 = vadd.f32 %v1024, %v1170
        %v1538 = vadd.f32 %v1025, %v1170
        %v1539 = vadd.f32 %v1026, %v1170
        %v1540 = vadd.f32 %v1027, %v1170
        %v1541 = vadd.f32 %v1028, %v1170
        %v1542 = vadd.f32 %v1029, %v1170
        %v1543 = vadd.f32 %v1030, %v1170
        %v1544 = vadd.f32 %v1031, %v1170
        %v1545 = vadd.f32 %v1032, %v1170
        %v1546 = vadd.f32 %v1033, %v1170
        %v1547 = vadd.f32 %v1034, %v1170
        %v1548 = vadd.f32 %v1035, %v1170
        %v1549 = vadd.f32 %v1036, %v1170
        %v1550 = vadd.f32 %v1037, %v1170
        %v1551 = vadd.f32 %v1038, %v1170
        %v1552 = vadd.f32 %v1039, %v1170
        %v1553 = vadd.f32 %v1040, %v1170
        %v1554 = vadd.f32 %v1041, %v1170
        %v1555 = vadd.f32 %v1042, %v1170
        %v1556 = vadd.f32 %v1043, %v1170
        %v1557 = vadd.f32 %v1044, %v1170
        %v1558 = vadd.f32 %v1045, %v1170
        %v1559 = vadd.f32 %v1046, %v1170
        %v1560 = vadd.f32 %v1047, %v1170
        %v1561 = vadd.f32 %v1048, %v1170
        %v1562 = vadd.f32 %v1049, %v1170
        %v1563 = vadd.f32 %v1050, %v1170
        %v1564 = vadd.f32 %v1051, %v1170
        %v1565 = vadd.f32 %v1052, %v1170
        %v1566 = vadd.f32 %v1053, %v1170
        %v1567 = vadd.f32 %v1054, %v1170
        %v1568 = vadd.f32 %v1055, %v1170
        %v1569 = vadd.f32 %v1056, %v1170
        %v1570 = vadd.f32 %v1057, %v1170
        %v1571 = vadd.f32 %v1058, %v1170
        %v1572 = vadd.f32 %v1059, %v1170
        %v1573 = vadd.f32 %v1060, %v1170
        %v1574 = vadd.f32 %v1061, %v1170
        %v1575 = vadd.f32 %v1062, %v1170
        %v1576 = vadd.f32 %v1063, %v1170
        %v1577 = vadd.f32 %v1064, %v1170
        %v1578 = vadd.f32 %v1065, %v1170
        %v1579 = vadd.f32 %v1066, %v1170
        %v1580 = vadd.f32 %v1067, %v1170
        %v1581 = vadd.f32 %v1068, %v1170
        %v1582 = vadd.f32 %v1069, %v1170
        %v1583 = vadd.f32 %v1070, %v1170
        %v1584 = vadd.f32 %v1071, %v1170
        %v1585 = vadd.f32 %v1072, %v1170
        %v1586 = vadd.f32 %v1073, %v1170
        %v1587 = vadd.f32 %v1074, %v1170
        %v1588 = vadd.f32 %v1075, %v1170
        %v1589 = vadd.f32 %v1076, %v1170
        %v1590 = vadd.f32 %v1077, %v1170
        %v1591 = vadd.f32 %v1078, %v1170
        %v1592 = vadd.f32 %v1079, %v1170
        %v1593 = vadd.f32 %v1080, %v1170
        %v1594 = vadd.f32 %v1081, %v1170
        %v1595 = vadd.f32 %v1082, %v1170
        %v1596 = vadd.f32 %v1083, %v1170
        %v1597 = vadd.f32 %v1084, %v1170
        %v1598 = vadd.f32 %v1085, %v1170
        %v1599 = vadd.f32 %v1086, %v1170
        %v1600 = vadd.f32 %v1087, %v1170
        %v1601 = vadd.f32 %v1088, %v1170
        %v1602 = vadd.f32 %v1089, %v1170
        %v1603 = vadd.f32 %v1090, %v1170
        %v1604 = vadd.f32 %v1091, %v1170
        %v1605 = vadd.f32 %v1092, %v1170
        %v1606 = vadd.f32 %v1093, %v1170
        %v1607 = vadd.f32 %v1094, %v1170
        %v1608 = vadd.f32 %v1095, %v1170
        %v1609 = vadd.f32 %v1096, %v1170
        %v1610 = vadd.f32 %v1097, %v1170
        %v1611 = vadd.f32 %v1098, %v1170
        %v1612 = vadd.f32 %v1099, %v1170
        %v1613 = vadd.f32 %v1100, %v1170
        %v1614 = vadd.f32 %v1101, %v1170
        %v1615 = vadd.f32 %v1102, %v1170
        %v1616 = vadd.f32 %v1103, %v1170
        %v1617 = vadd.f32 %v1104, %v1170
        %v1618 = vadd.f32 %v1105, %v1170
        %v1619 = vadd.f32 %v1106, %v1170
        %v1620 = vadd.f32 %v1107, %v1170
        %v1621 = vadd.f32 %v1108, %v1170
        %v1622 = vadd.f32 %v1109, %v1170
        %v1623 = vadd.f32 %v1110, %v1170
        %v1624 = vadd.f32 %v1111, %v1170
        %v1625 = vadd.f32 %v1112, %v1170
        %v1626 = vadd.f32 %v1113, %v1170
        %v1627 = vadd.f32 %v1114, %v1170
        %v1628 = vadd.f32 %v1115, %v1170
        %v1629 = vadd.f32 %v1116, %v1170
        %v1630 = vadd.f32 %v1117, %v1170
        %v1631 = vadd.f32 %v1118, %v1170
        %v1632 = vadd.f32 %v1119, %v1170
        %v1633 = vadd.f32 %v1120, %v1170
        %v1634 = vadd.f32 %v1121, %v1170
        %v1635 = vadd.f32 %v1122, %v1170
        %v1636 = vadd.f32 %v1123, %v1170
        %v1637 = vadd.f32 %v1124, %v1170
        %v1638 = vadd.f32 %v1125, %v1170
        %v1639 = vadd.f32 %v1126, %v1170
        %v1640 = vadd.f32 %v1127, %v1170
        %v1641 = vadd.f32 %v1128, %v1170
        %v1642 = vadd.f32 %v1129, %v1170
        %v1643 = vadd.f32 %v1130, %v1170
        %v1644 = vadd.f32 %v1131, %v1170
        %v1645 = vadd.f32 %v1132, %v1170
        %v1646 = vadd.f32 %v1133, %v1170
        %v1647 = vadd.f32 %v1134, %v1170
        %v1648 = vadd.f32 %v1135, %v1170
        %v1649 = vadd.f32 %v1136, %v1170
        %v1650 = vadd.f32 %v1137, %v1170
        %v1651 = vadd.f32 %v1138, %v1170
        %v1652 = vadd.f32 %v1139, %v1170
        %v1653 = vadd.f32 %v1140, %v1170
        %v1654 = vadd.f32 %v1141, %v1170
        %v1655 = vadd.f32 %v1142, %v1170
        %v1656 = vadd.f32 %v1143, %v1170
        %v1657 = vadd.f32 %v1144, %v1170
        %v1658 = vadd.f32 %v1145, %v1170
        %v1659 = vadd.f32 %v1146, %v1170
        %v1660 = vadd.f32 %v1147, %v1170
        %v1661 = vadd.f32 %v1148, %v1170
        %v1662 = vadd.f32 %v1149, %v1170
        %v1663 = vadd.f32 %v1150, %v1170
        %v1664 = vadd.f32 %v1151, %v1170
        %v1665 = vadd.f32 %v1152, %v1170
        %v1666 = vadd.f32 %v1153, %v1170
        %v1667 = vadd.f32 %v1154, %v1170
        %v1668 = vadd.f32 %v1155, %v1170
        %v1669 = vadd.f32 %v1156, %v1170
        %v1670 = vadd.f32 %v1157, %v1170
        %v1671 = vadd.f32 %v1158, %v1170
        %v1672 = vadd.f32 %v1159, %v1170
        %v1673 = vadd.f32 %v1160, %v1170
        %v1674 = vadd.f32 %v1161, %v1170
        %v1675 = vadd.f32 %v1162, %v1170
        %v1676 = vadd.f32 %v1163, %v1170
        %v1677 = vadd.f32 %v1164, %v1170
        %v1678 = vadd.f32 %v1165, %v1170
        %v1679 = vadd.f32 %v1166, %v1170
        %v1680 = vadd.f32 %v1167, %v1170
        %v1681 = vadd.f32 %v1168, %v1170
        %v1682 = vadd.f32 %v1169, %v1170
        %1683 = vst [vmem:[%s140] sm:$0xff] %v1171
        %1684 = vst [vmem:[%s140 + $0x8] sm:$0xff] %v1172
        %1685 = vst [vmem:[%s140 + $0x10] sm:$0xff] %v1173
        %1686 = vst [vmem:[%s140 + $0x18] sm:$0xff] %v1174
        %1687 = vst [vmem:[%s140 + $0x20] sm:$0xff] %v1175
        %1688 = vst [vmem:[%s140 + $0x28] sm:$0xff] %v1176
        %1689 = vst [vmem:[%s140 + $0x30] sm:$0xff] %v1177
        %1690 = vst [vmem:[%s140 + $0x38] sm:$0xff] %v1178
        %1691 = vst [vmem:[%s140 + $0x40] sm:$0xff] %v1179
        %1692 = vst [vmem:[%s140 + $0x48] sm:$0xff] %v1180
        %1693 = vst [vmem:[%s140 + $0x50] sm:$0xff] %v1181
        %1694 = vst [vmem:[%s140 + $0x58] sm:$0xff] %v1182
        %1695 = vst [vmem:[%s140 + $0x60] sm:$0xff] %v1183
        %1696 = vst [vmem:[%s140 + $0x68] sm:$0xff] %v1184
        %1697 = vst [vmem:[%s140 + $0x70] sm:$0xff] %v1185
        %1698 = vst [vmem:[%s140 + $0x78] sm:$0xff] %v1186
        %1699 = vst [vmem:[%s140 + $0x80] sm:$0xff] %v1187
        %1700 = vst [vmem:[%s140 + $0x88] sm:$0xff] %v1188
        %1701 = vst [vmem:[%s140 + $0x90] sm:$0xff] %v1189
        %1702 = vst [vmem:[%s140 + $0x98] sm:$0xff] %v1190
        %1703 = vst [vmem:[%s140 + $0xa0] sm:$0xff] %v1191
        %1704 = vst [vmem:[%s140 + $0xa8] sm:$0xff] %v1192
        %1705 = vst [vmem:[%s140 + $0xb0] sm:$0xff] %v1193
        %1706 = vst [vmem:[%s140 + $0xb8] sm:$0xff] %v1194
        %1707 = vst [vmem:[%s140 + $0xc0] sm:$0xff] %v1195
        %1708 = vst [vmem:[%s140 + $0xc8] sm:$0xff] %v1196
        %1709 = vst [vmem:[%s140 + $0xd0] sm:$0xff] %v1197
        %1710 = vst [vmem:[%s140 + $0xd8] sm:$0xff] %v1198
        %1711 = vst [vmem:[%s140 + $0xe0] sm:$0xff] %v1199
        %1712 = vst [vmem:[%s140 + $0xe8] sm:$0xff] %v1200
        %1713 = vst [vmem:[%s140 + $0xf0] sm:$0xff] %v1201
        %1714 = vst [vmem:[%s140 + $0xf8] sm:$0xff] %v1202
        %1715 = vst [vmem:[%s140 + $0x100] sm:$0xff] %v1203
        %1716 = vst [vmem:[%s140 + $0x108] sm:$0xff] %v1204
        %1717 = vst [vmem:[%s140 + $0x110] sm:$0xff] %v1205
        %1718 = vst [vmem:[%s140 + $0x118] sm:$0xff] %v1206
        %1719 = vst [vmem:[%s140 + $0x120] sm:$0xff] %v1207
        %1720 = vst [vmem:[%s140 + $0x128] sm:$0xff] %v1208
        %1721 = vst [vmem:[%s140 + $0x130] sm:$0xff] %v1209
        %1722 = vst [vmem:[%s140 + $0x138] sm:$0xff] %v1210
        %1723 = vst [vmem:[%s140 + $0x140] sm:$0xff] %v1211
        %1724 = vst [vmem:[%s140 + $0x148] sm:$0xff] %v1212
        %1725 = vst [vmem:[%s140 + $0x150] sm:$0xff] %v1213
        %1726 = vst [vmem:[%s140 + $0x158] sm:$0xff] %v1214
        %1727 = vst [vmem:[%s140 + $0x160] sm:$0xff] %v1215
        %1728 = vst [vmem:[%s140 + $0x168] sm:$0xff] %v1216
        %1729 = vst [vmem:[%s140 + $0x170] sm:$0xff] %v1217
        %1730 = vst [vmem:[%s140 + $0x178] sm:$0xff] %v1218
        %1731 = vst [vmem:[%s140 + $0x180] sm:$0xff] %v1219
        %1732 = vst [vmem:[%s140 + $0x188] sm:$0xff] %v1220
        %1733 = vst [vmem:[%s140 + $0x190] sm:$0xff] %v1221
        %1734 = vst [vmem:[%s140 + $0x198] sm:$0xff] %v1222
        %1735 = vst [vmem:[%s140 + $0x1a0] sm:$0xff] %v1223
        %1736 = vst [vmem:[%s140 + $0x1a8] sm:$0xff] %v1224
        %1737 = vst [vmem:[%s140 + $0x1b0] sm:$0xff] %v1225
        %1738 = vst [vmem:[%s140 + $0x1b8] sm:$0xff] %v1226
        %1739 = vst [vmem:[%s140 + $0x1c0] sm:$0xff] %v1227
        %1740 = vst [vmem:[%s140 + $0x1c8] sm:$0xff] %v1228
        %1741 = vst [vmem:[%s140 + $0x1d0] sm:$0xff] %v1229
        %1742 = vst [vmem:[%s140 + $0x1d8] sm:$0xff] %v1230
        %1743 = vst [vmem:[%s140 + $0x1e0] sm:$0xff] %v1231
        %1744 = vst [vmem:[%s140 + $0x1e8] sm:$0xff] %v1232
        %1745 = vst [vmem:[%s140 + $0x1f0] sm:$0xff] %v1233
        %1746 = vst [vmem:[%s140 + $0x1f8] sm:$0xff] %v1234
        %1747 = vst [vmem:[%s140 + $0x200] sm:$0xff] %v1235
        %1748 = vst [vmem:[%s140 + $0x208] sm:$0xff] %v1236
        %1749 = vst [vmem:[%s140 + $0x210] sm:$0xff] %v1237
        %1750 = vst [vmem:[%s140 + $0x218] sm:$0xff] %v1238
        %1751 = vst [vmem:[%s140 + $0x220] sm:$0xff] %v1239
        %1752 = vst [vmem:[%s140 + $0x228] sm:$0xff] %v1240
        %1753 = vst [vmem:[%s140 + $0x230] sm:$0xff] %v1241
        %1754 = vst [vmem:[%s140 + $0x238] sm:$0xff] %v1242
        %1755 = vst [vmem:[%s140 + $0x240] sm:$0xff] %v1243
        %1756 = vst [vmem:[%s140 + $0x248] sm:$0xff] %v1244
        %1757 = vst [vmem:[%s140 + $0x250] sm:$0xff] %v1245
        %1758 = vst [vmem:[%s140 + $0x258] sm:$0xff] %v1246
        %1759 = vst [vmem:[%s140 + $0x260] sm:$0xff] %v1247
        %1760 = vst [vmem:[%s140 + $0x268] sm:$0xff] %v1248
        %1761 = vst [vmem:[%s140 + $0x270] sm:$0xff] %v1249
        %1762 = vst [vmem:[%s140 + $0x278] sm:$0xff] %v1250
        %1763 = vst [vmem:[%s140 + $0x280] sm:$0xff] %v1251
        %1764 = vst [vmem:[%s140 + $0x288] sm:$0xff] %v1252
        %1765 = vst [vmem:[%s140 + $0x290] sm:$0xff] %v1253
        %1766 = vst [vmem:[%s140 + $0x298] sm:$0xff] %v1254
        %1767 = vst [vmem:[%s140 + $0x2a0] sm:$0xff] %v1255
        %1768 = vst [vmem:[%s140 + $0x2a8] sm:$0xff] %v1256
        %1769 = vst [vmem:[%s140 + $0x2b0] sm:$0xff] %v1257
        %1770 = vst [vmem:[%s140 + $0x2b8] sm:$0xff] %v1258
        %1771 = vst [vmem:[%s140 + $0x2c0] sm:$0xff] %v1259
        %1772 = vst [vmem:[%s140 + $0x2c8] sm:$0xff] %v1260
        %1773 = vst [vmem:[%s140 + $0x2d0] sm:$0xff] %v1261
        %1774 = vst [vmem:[%s140 + $0x2d8] sm:$0xff] %v1262
        %1775 = vst [vmem:[%s140 + $0x2e0] sm:$0xff] %v1263
        %1776 = vst [vmem:[%s140 + $0x2e8] sm:$0xff] %v1264
        %1777 = vst [vmem:[%s140 + $0x2f0] sm:$0xff] %v1265
        %1778 = vst [vmem:[%s140 + $0x2f8] sm:$0xff] %v1266
        %1779 = vst [vmem:[%s140 + $0x300] sm:$0xff] %v1267
        %1780 = vst [vmem:[%s140 + $0x308] sm:$0xff] %v1268
        %1781 = vst [vmem:[%s140 + $0x310] sm:$0xff] %v1269
        %1782 = vst [vmem:[%s140 + $0x318] sm:$0xff] %v1270
        %1783 = vst [vmem:[%s140 + $0x320] sm:$0xff] %v1271
        %1784 = vst [vmem:[%s140 + $0x328] sm:$0xff] %v1272
        %1785 = vst [vmem:[%s140 + $0x330] sm:$0xff] %v1273
        %1786 = vst [vmem:[%s140 + $0x338] sm:$0xff] %v1274
        %1787 = vst [vmem:[%s140 + $0x340] sm:$0xff] %v1275
        %1788 = vst [vmem:[%s140 + $0x348] sm:$0xff] %v1276
        %1789 = vst [vmem:[%s140 + $0x350] sm:$0xff] %v1277
        %1790 = vst [vmem:[%s140 + $0x358] sm:$0xff] %v1278
        %1791 = vst [vmem:[%s140 + $0x360] sm:$0xff] %v1279
        %1792 = vst [vmem:[%s140 + $0x368] sm:$0xff] %v1280
        %1793 = vst [vmem:[%s140 + $0x370] sm:$0xff] %v1281
        %1794 = vst [vmem:[%s140 + $0x378] sm:$0xff] %v1282
        %1795 = vst [vmem:[%s140 + $0x380] sm:$0xff] %v1283
        %1796 = vst [vmem:[%s140 + $0x388] sm:$0xff] %v1284
        %1797 = vst [vmem:[%s140 + $0x390] sm:$0xff] %v1285
        %1798 = vst [vmem:[%s140 + $0x398] sm:$0xff] %v1286
        %1799 = vst [vmem:[%s140 + $0x3a0] sm:$0xff] %v1287
        %1800 = vst [vmem:[%s140 + $0x3a8] sm:$0xff] %v1288
        %1801 = vst [vmem:[%s140 + $0x3b0] sm:$0xff] %v1289
        %1802 = vst [vmem:[%s140 + $0x3b8] sm:$0xff] %v1290
        %1803 = vst [vmem:[%s140 + $0x3c0] sm:$0xff] %v1291
        %1804 = vst [vmem:[%s140 + $0x3c8] sm:$0xff] %v1292
        %1805 = vst [vmem:[%s140 + $0x3d0] sm:$0xff] %v1293
        %1806 = vst [vmem:[%s140 + $0x3d8] sm:$0xff] %v1294
        %1807 = vst [vmem:[%s140 + $0x3e0] sm:$0xff] %v1295
        %1808 = vst [vmem:[%s140 + $0x3e8] sm:$0xff] %v1296
        %1809 = vst [vmem:[%s140 + $0x3f0] sm:$0xff] %v1297
        %1810 = vst [vmem:[%s140 + $0x3f8] sm:$0xff] %v1298
        %1811 = vst [vmem:[%s140 + $0x400] sm:$0xff] %v1299
        %1812 = vst [vmem:[%s140 + $0x408] sm:$0xff] %v1300
        %1813 = vst [vmem:[%s140 + $0x410] sm:$0xff] %v1301
        %1814 = vst [vmem:[%s140 + $0x418] sm:$0xff] %v1302
        %1815 = vst [vmem:[%s140 + $0x420] sm:$0xff] %v1303
        %1816 = vst [vmem:[%s140 + $0x428] sm:$0xff] %v1304
        %1817 = vst [vmem:[%s140 + $0x430] sm:$0xff] %v1305
        %1818 = vst [vmem:[%s140 + $0x438] sm:$0xff] %v1306
        %1819 = vst [vmem:[%s140 + $0x440] sm:$0xff] %v1307
        %1820 = vst [vmem:[%s140 + $0x448] sm:$0xff] %v1308
        %1821 = vst [vmem:[%s140 + $0x450] sm:$0xff] %v1309
        %1822 = vst [vmem:[%s140 + $0x458] sm:$0xff] %v1310
        %1823 = vst [vmem:[%s140 + $0x460] sm:$0xff] %v1311
        %1824 = vst [vmem:[%s140 + $0x468] sm:$0xff] %v1312
        %1825 = vst [vmem:[%s140 + $0x470] sm:$0xff] %v1313
        %1826 = vst [vmem:[%s140 + $0x478] sm:$0xff] %v1314
        %1827 = vst [vmem:[%s140 + $0x480] sm:$0xff] %v1315
        %1828 = vst [vmem:[%s140 + $0x488] sm:$0xff] %v1316
        %1829 = vst [vmem:[%s140 + $0x490] sm:$0xff] %v1317
        %1830 = vst [vmem:[%s140 + $0x498] sm:$0xff] %v1318
        %1831 = vst [vmem:[%s140 + $0x4a0] sm:$0xff] %v1319
        %1832 = vst [vmem:[%s140 + $0x4a8] sm:$0xff] %v1320
        %1833 = vst [vmem:[%s140 + $0x4b0] sm:$0xff] %v1321
        %1834 = vst [vmem:[%s140 + $0x4b8] sm:$0xff] %v1322
        %1835 = vst [vmem:[%s140 + $0x4c0] sm:$0xff] %v1323
        %1836 = vst [vmem:[%s140 + $0x4c8] sm:$0xff] %v1324
        %1837 = vst [vmem:[%s140 + $0x4d0] sm:$0xff] %v1325
        %1838 = vst [vmem:[%s140 + $0x4d8] sm:$0xff] %v1326
        %1839 = vst [vmem:[%s140 + $0x4e0] sm:$0xff] %v1327
        %1840 = vst [vmem:[%s140 + $0x4e8] sm:$0xff] %v1328
        %1841 = vst [vmem:[%s140 + $0x4f0] sm:$0xff] %v1329
        %1842 = vst [vmem:[%s140 + $0x4f8] sm:$0xff] %v1330
        %1843 = vst [vmem:[%s140 + $0x500] sm:$0xff] %v1331
        %1844 = vst [vmem:[%s140 + $0x508] sm:$0xff] %v1332
        %1845 = vst [vmem:[%s140 + $0x510] sm:$0xff] %v1333
        %1846 = vst [vmem:[%s140 + $0x518] sm:$0xff] %v1334
        %1847 = vst [vmem:[%s140 + $0x520] sm:$0xff] %v1335
        %1848 = vst [vmem:[%s140 + $0x528] sm:$0xff] %v1336
        %1849 = vst [vmem:[%s140 + $0x530] sm:$0xff] %v1337
        %1850 = vst [vmem:[%s140 + $0x538] sm:$0xff] %v1338
        %1851 = vst [vmem:[%s140 + $0x540] sm:$0xff] %v1339
        %1852 = vst [vmem:[%s140 + $0x548] sm:$0xff] %v1340
        %1853 = vst [vmem:[%s140 + $0x550] sm:$0xff] %v1341
        %1854 = vst [vmem:[%s140 + $0x558] sm:$0xff] %v1342
        %1855 = vst [vmem:[%s140 + $0x560] sm:$0xff] %v1343
        %1856 = vst [vmem:[%s140 + $0x568] sm:$0xff] %v1344
        %1857 = vst [vmem:[%s140 + $0x570] sm:$0xff] %v1345
        %1858 = vst [vmem:[%s140 + $0x578] sm:$0xff] %v1346
        %1859 = vst [vmem:[%s140 + $0x580] sm:$0xff] %v1347
        %1860 = vst [vmem:[%s140 + $0x588] sm:$0xff] %v1348
        %1861 = vst [vmem:[%s140 + $0x590] sm:$0xff] %v1349
        %1862 = vst [vmem:[%s140 + $0x598] sm:$0xff] %v1350
        %1863 = vst [vmem:[%s140 + $0x5a0] sm:$0xff] %v1351
        %1864 = vst [vmem:[%s140 + $0x5a8] sm:$0xff] %v1352
        %1865 = vst [vmem:[%s140 + $0x5b0] sm:$0xff] %v1353
        %1866 = vst [vmem:[%s140 + $0x5b8] sm:$0xff] %v1354
        %1867 = vst [vmem:[%s140 + $0x5c0] sm:$0xff] %v1355
        %1868 = vst [vmem:[%s140 + $0x5c8] sm:$0xff] %v1356
        %1869 = vst [vmem:[%s140 + $0x5d0] sm:$0xff] %v1357
        %1870 = vst [vmem:[%s140 + $0x5d8] sm:$0xff] %v1358
        %1871 = vst [vmem:[%s140 + $0x5e0] sm:$0xff] %v1359
        %1872 = vst [vmem:[%s140 + $0x5e8] sm:$0xff] %v1360
        %1873 = vst [vmem:[%s140 + $0x5f0] sm:$0xff] %v1361
        %1874 = vst [vmem:[%s140 + $0x5f8] sm:$0xff] %v1362
        %1875 = vst [vmem:[%s140 + $0x600] sm:$0xff] %v1363
        %1876 = vst [vmem:[%s140 + $0x608] sm:$0xff] %v1364
        %1877 = vst [vmem:[%s140 + $0x610] sm:$0xff] %v1365
        %1878 = vst [vmem:[%s140 + $0x618] sm:$0xff] %v1366
        %1879 = vst [vmem:[%s140 + $0x620] sm:$0xff] %v1367
        %1880 = vst [vmem:[%s140 + $0x628] sm:$0xff] %v1368
        %1881 = vst [vmem:[%s140 + $0x630] sm:$0xff] %v1369
        %1882 = vst [vmem:[%s140 + $0x638] sm:$0xff] %v1370
        %1883 = vst [vmem:[%s140 + $0x640] sm:$0xff] %v1371
        %1884 = vst [vmem:[%s140 + $0x648] sm:$0xff] %v1372
        %1885 = vst [vmem:[%s140 + $0x650] sm:$0xff] %v1373
        %1886 = vst [vmem:[%s140 + $0x658] sm:$0xff] %v1374
        %1887 = vst [vmem:[%s140 + $0x660] sm:$0xff] %v1375
        %1888 = vst [vmem:[%s140 + $0x668] sm:$0xff] %v1376
        %1889 = vst [vmem:[%s140 + $0x670] sm:$0xff] %v1377
        %1890 = vst [vmem:[%s140 + $0x678] sm:$0xff] %v1378
        %1891 = vst [vmem:[%s140 + $0x680] sm:$0xff] %v1379
        %1892 = vst [vmem:[%s140 + $0x688] sm:$0xff] %v1380
        %1893 = vst [vmem:[%s140 + $0x690] sm:$0xff] %v1381
        %1894 = vst [vmem:[%s140 + $0x698] sm:$0xff] %v1382
        %1895 = vst [vmem:[%s140 + $0x6a0] sm:$0xff] %v1383
        %1896 = vst [vmem:[%s140 + $0x6a8] sm:$0xff] %v1384
        %1897 = vst [vmem:[%s140 + $0x6b0] sm:$0xff] %v1385
        %1898 = vst [vmem:[%s140 + $0x6b8] sm:$0xff] %v1386
        %1899 = vst [vmem:[%s140 + $0x6c0] sm:$0xff] %v1387
        %1900 = vst [vmem:[%s140 + $0x6c8] sm:$0xff] %v1388
        %1901 = vst [vmem:[%s140 + $0x6d0] sm:$0xff] %v1389
        %1902 = vst [vmem:[%s140 + $0x6d8] sm:$0xff] %v1390
        %1903 = vst [vmem:[%s140 + $0x6e0] sm:$0xff] %v1391
        %1904 = vst [vmem:[%s140 + $0x6e8] sm:$0xff] %v1392
        %1905 = vst [vmem:[%s140 + $0x6f0] sm:$0xff] %v1393
        %1906 = vst [vmem:[%s140 + $0x6f8] sm:$0xff] %v1394
        %1907 = vst [vmem:[%s140 + $0x700] sm:$0xff] %v1395
        %1908 = vst [vmem:[%s140 + $0x708] sm:$0xff] %v1396
        %1909 = vst [vmem:[%s140 + $0x710] sm:$0xff] %v1397
        %1910 = vst [vmem:[%s140 + $0x718] sm:$0xff] %v1398
        %1911 = vst [vmem:[%s140 + $0x720] sm:$0xff] %v1399
        %1912 = vst [vmem:[%s140 + $0x728] sm:$0xff] %v1400
        %1913 = vst [vmem:[%s140 + $0x730] sm:$0xff] %v1401
        %1914 = vst [vmem:[%s140 + $0x738] sm:$0xff] %v1402
        %1915 = vst [vmem:[%s140 + $0x740] sm:$0xff] %v1403
        %1916 = vst [vmem:[%s140 + $0x748] sm:$0xff] %v1404
        %1917 = vst [vmem:[%s140 + $0x750] sm:$0xff] %v1405
        %1918 = vst [vmem:[%s140 + $0x758] sm:$0xff] %v1406
        %1919 = vst [vmem:[%s140 + $0x760] sm:$0xff] %v1407
        %1920 = vst [vmem:[%s140 + $0x768] sm:$0xff] %v1408
        %1921 = vst [vmem:[%s140 + $0x770] sm:$0xff] %v1409
        %1922 = vst [vmem:[%s140 + $0x778] sm:$0xff] %v1410
        %1923 = vst [vmem:[%s140 + $0x780] sm:$0xff] %v1411
        %1924 = vst [vmem:[%s140 + $0x788] sm:$0xff] %v1412
        %1925 = vst [vmem:[%s140 + $0x790] sm:$0xff] %v1413
        %1926 = vst [vmem:[%s140 + $0x798] sm:$0xff] %v1414
        %1927 = vst [vmem:[%s140 + $0x7a0] sm:$0xff] %v1415
        %1928 = vst [vmem:[%s140 + $0x7a8] sm:$0xff] %v1416
        %1929 = vst [vmem:[%s140 + $0x7b0] sm:$0xff] %v1417
        %1930 = vst [vmem:[%s140 + $0x7b8] sm:$0xff] %v1418
        %1931 = vst [vmem:[%s140 + $0x7c0] sm:$0xff] %v1419
        %1932 = vst [vmem:[%s140 + $0x7c8] sm:$0xff] %v1420
        %1933 = vst [vmem:[%s140 + $0x7d0] sm:$0xff] %v1421
        %1934 = vst [vmem:[%s140 + $0x7d8] sm:$0xff] %v1422
        %1935 = vst [vmem:[%s140 + $0x7e0] sm:$0xff] %v1423
        %1936 = vst [vmem:[%s140 + $0x7e8] sm:$0xff] %v1424
        %1937 = vst [vmem:[%s140 + $0x7f0] sm:$0xff] %v1425
        %1938 = vst [vmem:[%s140 + $0x7f8] sm:$0xff] %v1426
        %1939 = vst [vmem:[%s140 + $0x800] sm:$0xff] %v1427
        %1940 = vst [vmem:[%s140 + $0x808] sm:$0xff] %v1428
        %1941 = vst [vmem:[%s140 + $0x810] sm:$0xff] %v1429
        %1942 = vst [vmem:[%s140 + $0x818] sm:$0xff] %v1430
        %1943 = vst [vmem:[%s140 + $0x820] sm:$0xff] %v1431
        %1944 = vst [vmem:[%s140 + $0x828] sm:$0xff] %v1432
        %1945 = vst [vmem:[%s140 + $0x830] sm:$0xff] %v1433
        %1946 = vst [vmem:[%s140 + $0x838] sm:$0xff] %v1434
        %1947 = vst [vmem:[%s140 + $0x840] sm:$0xff] %v1435
        %1948 = vst [vmem:[%s140 + $0x848] sm:$0xff] %v1436
        %1949 = vst [vmem:[%s140 + $0x850] sm:$0xff] %v1437
        %1950 = vst [vmem:[%s140 + $0x858] sm:$0xff] %v1438
        %1951 = vst [vmem:[%s140 + $0x860] sm:$0xff] %v1439
        %1952 = vst [vmem:[%s140 + $0x868] sm:$0xff] %v1440
        %1953 = vst [vmem:[%s140 + $0x870] sm:$0xff] %v1441
        %1954 = vst [vmem:[%s140 + $0x878] sm:$0xff] %v1442
        %1955 = vst [vmem:[%s140 + $0x880] sm:$0xff] %v1443
        %1956 = vst [vmem:[%s140 + $0x888] sm:$0xff] %v1444
        %1957 = vst [vmem:[%s140 + $0x890] sm:$0xff] %v1445
        %1958 = vst [vmem:[%s140 + $0x898] sm:$0xff] %v1446
        %1959 = vst [vmem:[%s140 + $0x8a0] sm:$0xff] %v1447
        %1960 = vst [vmem:[%s140 + $0x8a8] sm:$0xff] %v1448
        %1961 = vst [vmem:[%s140 + $0x8b0] sm:$0xff] %v1449
        %1962 = vst [vmem:[%s140 + $0x8b8] sm:$0xff] %v1450
        %1963 = vst [vmem:[%s140 + $0x8c0] sm:$0xff] %v1451
        %1964 = vst [vmem:[%s140 + $0x8c8] sm:$0xff] %v1452
        %1965 = vst [vmem:[%s140 + $0x8d0] sm:$0xff] %v1453
        %1966 = vst [vmem:[%s140 + $0x8d8] sm:$0xff] %v1454
        %1967 = vst [vmem:[%s140 + $0x8e0] sm:$0xff] %v1455
        %1968 = vst [vmem:[%s140 + $0x8e8] sm:$0xff] %v1456
        %1969 = vst [vmem:[%s140 + $0x8f0] sm:$0xff] %v1457
        %1970 = vst [vmem:[%s140 + $0x8f8] sm:$0xff] %v1458
        %1971 = vst [vmem:[%s140 + $0x900] sm:$0xff] %v1459
        %1972 = vst [vmem:[%s140 + $0x908] sm:$0xff] %v1460
        %1973 = vst [vmem:[%s140 + $0x910] sm:$0xff] %v1461
        %1974 = vst [vmem:[%s140 + $0x918] sm:$0xff] %v1462
        %1975 = vst [vmem:[%s140 + $0x920] sm:$0xff] %v1463
        %1976 = vst [vmem:[%s140 + $0x928] sm:$0xff] %v1464
        %1977 = vst [vmem:[%s140 + $0x930] sm:$0xff] %v1465
        %1978 = vst [vmem:[%s140 + $0x938] sm:$0xff] %v1466
        %1979 = vst [vmem:[%s140 + $0x940] sm:$0xff] %v1467
        %1980 = vst [vmem:[%s140 + $0x948] sm:$0xff] %v1468
        %1981 = vst [vmem:[%s140 + $0x950] sm:$0xff] %v1469
        %1982 = vst [vmem:[%s140 + $0x958] sm:$0xff] %v1470
        %1983 = vst [vmem:[%s140 + $0x960] sm:$0xff] %v1471
        %1984 = vst [vmem:[%s140 + $0x968] sm:$0xff] %v1472
        %1985 = vst [vmem:[%s140 + $0x970] sm:$0xff] %v1473
        %1986 = vst [vmem:[%s140 + $0x978] sm:$0xff] %v1474
        %1987 = vst [vmem:[%s140 + $0x980] sm:$0xff] %v1475
        %1988 = vst [vmem:[%s140 + $0x988] sm:$0xff] %v1476
        %1989 = vst [vmem:[%s140 + $0x990] sm:$0xff] %v1477
        %1990 = vst [vmem:[%s140 + $0x998] sm:$0xff] %v1478
        %1991 = vst [vmem:[%s140 + $0x9a0] sm:$0xff] %v1479
        %1992 = vst [vmem:[%s140 + $0x9a8] sm:$0xff] %v1480
        %1993 = vst [vmem:[%s140 + $0x9b0] sm:$0xff] %v1481
        %1994 = vst [vmem:[%s140 + $0x9b8] sm:$0xff] %v1482
        %1995 = vst [vmem:[%s140 + $0x9c0] sm:$0xff] %v1483
        %1996 = vst [vmem:[%s140 + $0x9c8] sm:$0xff] %v1484
        %1997 = vst [vmem:[%s140 + $0x9d0] sm:$0xff] %v1485
        %1998 = vst [vmem:[%s140 + $0x9d8] sm:$0xff] %v1486
        %1999 = vst [vmem:[%s140 + $0x9e0] sm:$0xff] %v1487
        %2000 = vst [vmem:[%s140 + $0x9e8] sm:$0xff] %v1488
        %2001 = vst [vmem:[%s140 + $0x9f0] sm:$0xff] %v1489
        %2002 = vst [vmem:[%s140 + $0x9f8] sm:$0xff] %v1490
        %2003 = vst [vmem:[%s140 + $0xa00] sm:$0xff] %v1491
        %2004 = vst [vmem:[%s140 + $0xa08] sm:$0xff] %v1492
        %2005 = vst [vmem:[%s140 + $0xa10] sm:$0xff] %v1493
        %2006 = vst [vmem:[%s140 + $0xa18] sm:$0xff] %v1494
        %2007 = vst [vmem:[%s140 + $0xa20] sm:$0xff] %v1495
        %2008 = vst [vmem:[%s140 + $0xa28] sm:$0xff] %v1496
        %2009 = vst [vmem:[%s140 + $0xa30] sm:$0xff] %v1497
        %2010 = vst [vmem:[%s140 + $0xa38] sm:$0xff] %v1498
        %2011 = vst [vmem:[%s140 + $0xa40] sm:$0xff] %v1499
        %2012 = vst [vmem:[%s140 + $0xa48] sm:$0xff] %v1500
        %2013 = vst [vmem:[%s140 + $0xa50] sm:$0xff] %v1501
        %2014 = vst [vmem:[%s140 + $0xa58] sm:$0xff] %v1502
        %2015 = vst [vmem:[%s140 + $0xa60] sm:$0xff] %v1503
        %2016 = vst [vmem:[%s140 + $0xa68] sm:$0xff] %v1504
        %2017 = vst [vmem:[%s140 + $0xa70] sm:$0xff] %v1505
        %2018 = vst [vmem:[%s140 + $0xa78] sm:$0xff] %v1506
        %2019 = vst [vmem:[%s140 + $0xa80] sm:$0xff] %v1507
        %2020 = vst [vmem:[%s140 + $0xa88] sm:$0xff] %v1508
        %2021 = vst [vmem:[%s140 + $0xa90] sm:$0xff] %v1509
        %2022 = vst [vmem:[%s140 + $0xa98] sm:$0xff] %v1510
        %2023 = vst [vmem:[%s140 + $0xaa0] sm:$0xff] %v1511
        %2024 = vst [vmem:[%s140 + $0xaa8] sm:$0xff] %v1512
        %2025 = vst [vmem:[%s140 + $0xab0] sm:$0xff] %v1513
        %2026 = vst [vmem:[%s140 + $0xab8] sm:$0xff] %v1514
        %2027 = vst [vmem:[%s140 + $0xac0] sm:$0xff] %v1515
        %2028 = vst [vmem:[%s140 + $0xac8] sm:$0xff] %v1516
        %2029 = vst [vmem:[%s140 + $0xad0] sm:$0xff] %v1517
        %2030 = vst [vmem:[%s140 + $0xad8] sm:$0xff] %v1518
        %2031 = vst [vmem:[%s140 + $0xae0] sm:$0xff] %v1519
        %2032 = vst [vmem:[%s140 + $0xae8] sm:$0xff] %v1520
        %2033 = vst [vmem:[%s140 + $0xaf0] sm:$0xff] %v1521
        %2034 = vst [vmem:[%s140 + $0xaf8] sm:$0xff] %v1522
        %2035 = vst [vmem:[%s140 + $0xb00] sm:$0xff] %v1523
        %2036 = vst [vmem:[%s140 + $0xb08] sm:$0xff] %v1524
        %2037 = vst [vmem:[%s140 + $0xb10] sm:$0xff] %v1525
        %2038 = vst [vmem:[%s140 + $0xb18] sm:$0xff] %v1526
        %2039 = vst [vmem:[%s140 + $0xb20] sm:$0xff] %v1527
        %2040 = vst [vmem:[%s140 + $0xb28] sm:$0xff] %v1528
        %2041 = vst [vmem:[%s140 + $0xb30] sm:$0xff] %v1529
        %2042 = vst [vmem:[%s140 + $0xb38] sm:$0xff] %v1530
        %2043 = vst [vmem:[%s140 + $0xb40] sm:$0xff] %v1531
        %2044 = vst [vmem:[%s140 + $0xb48] sm:$0xff] %v1532
        %2045 = vst [vmem:[%s140 + $0xb50] sm:$0xff] %v1533
        %2046 = vst [vmem:[%s140 + $0xb58] sm:$0xff] %v1534
        %2047 = vst [vmem:[%s140 + $0xb60] sm:$0xff] %v1535
        %2048 = vst [vmem:[%s140 + $0xb68] sm:$0xff] %v1536
        %2049 = vst [vmem:[%s140 + $0xb70] sm:$0xff] %v1537
        %2050 = vst [vmem:[%s140 + $0xb78] sm:$0xff] %v1538
        %2051 = vst [vmem:[%s140 + $0xb80] sm:$0xff] %v1539
        %2052 = vst [vmem:[%s140 + $0xb88] sm:$0xff] %v1540
        %2053 = vst [vmem:[%s140 + $0xb90] sm:$0xff] %v1541
        %2054 = vst [vmem:[%s140 + $0xb98] sm:$0xff] %v1542
        %2055 = vst [vmem:[%s140 + $0xba0] sm:$0xff] %v1543
        %2056 = vst [vmem:[%s140 + $0xba8] sm:$0xff] %v1544
        %2057 = vst [vmem:[%s140 + $0xbb0] sm:$0xff] %v1545
        %2058 = vst [vmem:[%s140 + $0xbb8] sm:$0xff] %v1546
        %2059 = vst [vmem:[%s140 + $0xbc0] sm:$0xff] %v1547
        %2060 = vst [vmem:[%s140 + $0xbc8] sm:$0xff] %v1548
        %2061 = vst [vmem:[%s140 + $0xbd0] sm:$0xff] %v1549
        %2062 = vst [vmem:[%s140 + $0xbd8] sm:$0xff] %v1550
        %2063 = vst [vmem:[%s140 + $0xbe0] sm:$0xff] %v1551
        %2064 = vst [vmem:[%s140 + $0xbe8] sm:$0xff] %v1552
        %2065 = vst [vmem:[%s140 + $0xbf0] sm:$0xff] %v1553
        %2066 = vst [vmem:[%s140 + $0xbf8] sm:$0xff] %v1554
        %2067 = vst [vmem:[%s140 + $0xc00] sm:$0xff] %v1555
        %2068 = vst [vmem:[%s140 + $0xc08] sm:$0xff] %v1556
        %2069 = vst [vmem:[%s140 + $0xc10] sm:$0xff] %v1557
        %2070 = vst [vmem:[%s140 + $0xc18] sm:$0xff] %v1558
        %2071 = vst [vmem:[%s140 + $0xc20] sm:$0xff] %v1559
        %2072 = vst [vmem:[%s140 + $0xc28] sm:$0xff] %v1560
        %2073 = vst [vmem:[%s140 + $0xc30] sm:$0xff] %v1561
        %2074 = vst [vmem:[%s140 + $0xc38] sm:$0xff] %v1562
        %2075 = vst [vmem:[%s140 + $0xc40] sm:$0xff] %v1563
        %2076 = vst [vmem:[%s140 + $0xc48] sm:$0xff] %v1564
        %2077 = vst [vmem:[%s140 + $0xc50] sm:$0xff] %v1565
        %2078 = vst [vmem:[%s140 + $0xc58] sm:$0xff] %v1566
        %2079 = vst [vmem:[%s140 + $0xc60] sm:$0xff] %v1567
        %2080 = vst [vmem:[%s140 + $0xc68] sm:$0xff] %v1568
        %2081 = vst [vmem:[%s140 + $0xc70] sm:$0xff] %v1569
        %2082 = vst [vmem:[%s140 + $0xc78] sm:$0xff] %v1570
        %2083 = vst [vmem:[%s140 + $0xc80] sm:$0xff] %v1571
        %2084 = vst [vmem:[%s140 + $0xc88] sm:$0xff] %v1572
        %2085 = vst [vmem:[%s140 + $0xc90] sm:$0xff] %v1573
        %2086 = vst [vmem:[%s140 + $0xc98] sm:$0xff] %v1574
        %2087 = vst [vmem:[%s140 + $0xca0] sm:$0xff] %v1575
        %2088 = vst [vmem:[%s140 + $0xca8] sm:$0xff] %v1576
        %2089 = vst [vmem:[%s140 + $0xcb0] sm:$0xff] %v1577
        %2090 = vst [vmem:[%s140 + $0xcb8] sm:$0xff] %v1578
        %2091 = vst [vmem:[%s140 + $0xcc0] sm:$0xff] %v1579
        %2092 = vst [vmem:[%s140 + $0xcc8] sm:$0xff] %v1580
        %2093 = vst [vmem:[%s140 + $0xcd0] sm:$0xff] %v1581
        %2094 = vst [vmem:[%s140 + $0xcd8] sm:$0xff] %v1582
        %2095 = vst [vmem:[%s140 + $0xce0] sm:$0xff] %v1583
        %2096 = vst [vmem:[%s140 + $0xce8] sm:$0xff] %v1584
        %2097 = vst [vmem:[%s140 + $0xcf0] sm:$0xff] %v1585
        %2098 = vst [vmem:[%s140 + $0xcf8] sm:$0xff] %v1586
        %2099 = vst [vmem:[%s140 + $0xd00] sm:$0xff] %v1587
        %2100 = vst [vmem:[%s140 + $0xd08] sm:$0xff] %v1588
        %2101 = vst [vmem:[%s140 + $0xd10] sm:$0xff] %v1589
        %2102 = vst [vmem:[%s140 + $0xd18] sm:$0xff] %v1590
        %2103 = vst [vmem:[%s140 + $0xd20] sm:$0xff] %v1591
        %2104 = vst [vmem:[%s140 + $0xd28] sm:$0xff] %v1592
        %2105 = vst [vmem:[%s140 + $0xd30] sm:$0xff] %v1593
        %2106 = vst [vmem:[%s140 + $0xd38] sm:$0xff] %v1594
        %2107 = vst [vmem:[%s140 + $0xd40] sm:$0xff] %v1595
        %2108 = vst [vmem:[%s140 + $0xd48] sm:$0xff] %v1596
        %2109 = vst [vmem:[%s140 + $0xd50] sm:$0xff] %v1597
        %2110 = vst [vmem:[%s140 + $0xd58] sm:$0xff] %v1598
        %2111 = vst [vmem:[%s140 + $0xd60] sm:$0xff] %v1599
        %2112 = vst [vmem:[%s140 + $0xd68] sm:$0xff] %v1600
        %2113 = vst [vmem:[%s140 + $0xd70] sm:$0xff] %v1601
        %2114 = vst [vmem:[%s140 + $0xd78] sm:$0xff] %v1602
        %2115 = vst [vmem:[%s140 + $0xd80] sm:$0xff] %v1603
        %2116 = vst [vmem:[%s140 + $0xd88] sm:$0xff] %v1604
        %2117 = vst [vmem:[%s140 + $0xd90] sm:$0xff] %v1605
        %2118 = vst [vmem:[%s140 + $0xd98] sm:$0xff] %v1606
        %2119 = vst [vmem:[%s140 + $0xda0] sm:$0xff] %v1607
        %2120 = vst [vmem:[%s140 + $0xda8] sm:$0xff] %v1608
        %2121 = vst [vmem:[%s140 + $0xdb0] sm:$0xff] %v1609
        %2122 = vst [vmem:[%s140 + $0xdb8] sm:$0xff] %v1610
        %2123 = vst [vmem:[%s140 + $0xdc0] sm:$0xff] %v1611
        %2124 = vst [vmem:[%s140 + $0xdc8] sm:$0xff] %v1612
        %2125 = vst [vmem:[%s140 + $0xdd0] sm:$0xff] %v1613
        %2126 = vst [vmem:[%s140 + $0xdd8] sm:$0xff] %v1614
        %2127 = vst [vmem:[%s140 + $0xde0] sm:$0xff] %v1615
        %2128 = vst [vmem:[%s140 + $0xde8] sm:$0xff] %v1616
        %2129 = vst [vmem:[%s140 + $0xdf0] sm:$0xff] %v1617
        %2130 = vst [vmem:[%s140 + $0xdf8] sm:$0xff] %v1618
        %2131 = vst [vmem:[%s140 + $0xe00] sm:$0xff] %v1619
        %2132 = vst [vmem:[%s140 + $0xe08] sm:$0xff] %v1620
        %2133 = vst [vmem:[%s140 + $0xe10] sm:$0xff] %v1621
        %2134 = vst [vmem:[%s140 + $0xe18] sm:$0xff] %v1622
        %2135 = vst [vmem:[%s140 + $0xe20] sm:$0xff] %v1623
        %2136 = vst [vmem:[%s140 + $0xe28] sm:$0xff] %v1624
        %2137 = vst [vmem:[%s140 + $0xe30] sm:$0xff] %v1625
        %2138 = vst [vmem:[%s140 + $0xe38] sm:$0xff] %v1626
        %2139 = vst [vmem:[%s140 + $0xe40] sm:$0xff] %v1627
        %2140 = vst [vmem:[%s140 + $0xe48] sm:$0xff] %v1628
        %2141 = vst [vmem:[%s140 + $0xe50] sm:$0xff] %v1629
        %2142 = vst [vmem:[%s140 + $0xe58] sm:$0xff] %v1630
        %2143 = vst [vmem:[%s140 + $0xe60] sm:$0xff] %v1631
        %2144 = vst [vmem:[%s140 + $0xe68] sm:$0xff] %v1632
        %2145 = vst [vmem:[%s140 + $0xe70] sm:$0xff] %v1633
        %2146 = vst [vmem:[%s140 + $0xe78] sm:$0xff] %v1634
        %2147 = vst [vmem:[%s140 + $0xe80] sm:$0xff] %v1635
        %2148 = vst [vmem:[%s140 + $0xe88] sm:$0xff] %v1636
        %2149 = vst [vmem:[%s140 + $0xe90] sm:$0xff] %v1637
        %2150 = vst [vmem:[%s140 + $0xe98] sm:$0xff] %v1638
        %2151 = vst [vmem:[%s140 + $0xea0] sm:$0xff] %v1639
        %2152 = vst [vmem:[%s140 + $0xea8] sm:$0xff] %v1640
        %2153 = vst [vmem:[%s140 + $0xeb0] sm:$0xff] %v1641
        %2154 = vst [vmem:[%s140 + $0xeb8] sm:$0xff] %v1642
        %2155 = vst [vmem:[%s140 + $0xec0] sm:$0xff] %v1643
        %2156 = vst [vmem:[%s140 + $0xec8] sm:$0xff] %v1644
        %2157 = vst [vmem:[%s140 + $0xed0] sm:$0xff] %v1645
        %2158 = vst [vmem:[%s140 + $0xed8] sm:$0xff] %v1646
        %2159 = vst [vmem:[%s140 + $0xee0] sm:$0xff] %v1647
        %2160 = vst [vmem:[%s140 + $0xee8] sm:$0xff] %v1648
        %2161 = vst [vmem:[%s140 + $0xef0] sm:$0xff] %v1649
        %2162 = vst [vmem:[%s140 + $0xef8] sm:$0xff] %v1650
        %2163 = vst [vmem:[%s140 + $0xf00] sm:$0xff] %v1651
        %2164 = vst [vmem:[%s140 + $0xf08] sm:$0xff] %v1652
        %2165 = vst [vmem:[%s140 + $0xf10] sm:$0xff] %v1653
        %2166 = vst [vmem:[%s140 + $0xf18] sm:$0xff] %v1654
        %2167 = vst [vmem:[%s140 + $0xf20] sm:$0xff] %v1655
        %2168 = vst [vmem:[%s140 + $0xf28] sm:$0xff] %v1656
        %2169 = vst [vmem:[%s140 + $0xf30] sm:$0xff] %v1657
        %2170 = vst [vmem:[%s140 + $0xf38] sm:$0xff] %v1658
        %2171 = vst [vmem:[%s140 + $0xf40] sm:$0xff] %v1659
        %2172 = vst [vmem:[%s140 + $0xf48] sm:$0xff] %v1660
        %2173 = vst [vmem:[%s140 + $0xf50] sm:$0xff] %v1661
        %2174 = vst [vmem:[%s140 + $0xf58] sm:$0xff] %v1662
        %2175 = vst [vmem:[%s140 + $0xf60] sm:$0xff] %v1663
        %2176 = vst [vmem:[%s140 + $0xf68] sm:$0xff] %v1664
        %2177 = vst [vmem:[%s140 + $0xf70] sm:$0xff] %v1665
        %2178 = vst [vmem:[%s140 + $0xf78] sm:$0xff] %v1666
        %2179 = vst [vmem:[%s140 + $0xf80] sm:$0xff] %v1667
        %2180 = vst [vmem:[%s140 + $0xf88] sm:$0xff] %v1668
        %2181 = vst [vmem:[%s140 + $0xf90] sm:$0xff] %v1669
        %2182 = vst [vmem:[%s140 + $0xf98] sm:$0xff] %v1670
        %2183 = vst [vmem:[%s140 + $0xfa0] sm:$0xff] %v1671
        %2184 = vst [vmem:[%s140 + $0xfa8] sm:$0xff] %v1672
        %2185 = vst [vmem:[%s140 + $0xfb0] sm:$0xff] %v1673
        %2186 = vst [vmem:[%s140 + $0xfb8] sm:$0xff] %v1674
        %2187 = vst [vmem:[%s140 + $0xfc0] sm:$0xff] %v1675
        %2188 = vst [vmem:[%s140 + $0xfc8] sm:$0xff] %v1676
        %2189 = vst [vmem:[%s140 + $0xfd0] sm:$0xff] %v1677
        %2190 = vst [vmem:[%s140 + $0xfd8] sm:$0xff] %v1678
        %2191 = vst [vmem:[%s140 + $0xfe0] sm:$0xff] %v1679
        %2192 = vst [vmem:[%s140 + $0xfe8] sm:$0xff] %v1680
        %2193 = vst [vmem:[%s140 + $0xff0] sm:$0xff] %v1681
        %2194 = vst [vmem:[%s140 + $0xff8] sm:$0xff] %v1682
        %s2195 = sand.u32 %s56, 1
        %s2196 = scalar_lea.sflag [#allocation7], %s2195
        %s2197 = sand.u32 %s56, 1
        %s2198 = smul.addr %s2197, 4096
        %s2199 = scalar_lea.vmem [#allocation8], %s2198
        // Predicated region
        $region29: #{watermelon_forward.1} parent=23 // pred_check
          %p2200 = pneg %p66
        $region30: #{watermelon_forward.1} parent=23 // pred_check_branch
          %2202 = sbr.rel (%p2200) target = $region32
        $region31: #{watermelon_forward.1} parent=23 // pred_region
          %s2203 = smul.u32 512, %s22
          %2205 = vsyncadd %s2196, 0
          %s2206 = smul.addr %s2203, 8
          %s2207 = scalar_lea.hbm %s3, %s2206
          %s2208 = sshll.u32 %s2199, 4
          %s2209 = int_to_ptr.vmem [resolvable:$true] %s2208
          %s2210 = sshll.u32 %s2207, 4
          %s2211 = int_to_ptr.hbm [resolvable:$true] %s2210
          %2216 = dma.vmem_to_hbm [thread:$0]  %s2209, 65536, %s2211, %s2196, 128, 128, 8
        $region32: #{watermelon_forward.1} parent=23 // pred_fallthru
          _
      $region24: #{watermelon_forward.1} parent=5 // pred_fallthru
        _
      %p2217 = scmp.le.s32.totalorder 2, %s17
      // Predicated region
      $region33: #{watermelon_forward.1} parent=5 // pred_check
        %p2218 = pneg %p2217
      $region34: #{watermelon_forward.1} parent=5 // pred_check_branch
        %2220 = sbr.rel (%p2218) target = $region36
      $region35: #{watermelon_forward.1} parent=5 // pred_region
        %s2221 = ssub.s32 %s17, 2
        // Predicated region
        $region37: #{watermelon_forward.1} parent=35 // pred_check
          %p2222 = pneg %p72
        $region38: #{watermelon_forward.1} parent=35 // pred_check_branch
          %2224 = sbr.rel (%p2222) target = $region40
        $region39: #{watermelon_forward.1} parent=35 // pred_region
          %s2225 = sand.u32 %s57, 1
          %s2226 = scalar_lea.sflag [#allocation7], %s2225
          %s2227 = sand.u32 %s57, 1
          %s2228 = smul.addr %s2227, 4096
          %s2229 = scalar_lea.vmem [#allocation8], %s2228
          %2231 = dma.done %s2226, 65536
        $region40: #{watermelon_forward.1} parent=35 // pred_fallthru
          _
      $region36: #{watermelon_forward.1} parent=5 // pred_fallthru
        _
    $region6: #{watermelon_forward.1} parent=1 // loop_footer
      %s21 = sadd.s32 1, %s17
    $region7: #{watermelon_forward.1} parent=1 // loop_footer_branch
      %16 = sbr.rel target = $region3
    $region8: #{watermelon_forward.1} parent=1 // loop_exit
      _
    %2232 = vsyncpa [#allocation6], 1
    %s2233 = scalar_lea.sflag [#allocation6], 1
    %2234 = vsyncpa %s2233, 1
    %2235 = vsyncpa [#allocation7], 1
    %s2236 = scalar_lea.sflag [#allocation7], 1
    %2237 = vsyncpa %s2236, 1

</llo_original>
